<compile_context>
chip_gen: v6e
topology: v6e:2x2x1
jax: 0.10.0
libtpu: 0.0.40
codegen_flags: <defaults>
</compile_context>

<pallas_src>
import functools

import jax
import jax.numpy as jnp
from jax import lax
from jax.experimental import pallas as pl
from jax.experimental.pallas import tpu as pltpu


def _supcon_kernel(feat_row_ref, feat_colT_ref, lab_row_ref, lab_col_ref,
                   out_ref, s1_ref, s2_ref, s3_ref,
                   *, base_margin, beta, eps, tb, tc, b_real):
    i = pl.program_id(0)          # row tile (parallel)
    j = pl.program_id(1)          # column tile (streaming reduction axis)

    @pl.when(j == 0)
    def _init():
        s1_ref[...] = jnp.zeros_like(s1_ref)
        s2_ref[...] = jnp.zeros_like(s2_ref)
        s3_ref[...] = jnp.zeros_like(s3_ref)

    # (TB, D) @ (D, TC) on the MXU with f32 accumulation.  1/temperature is
    # already folded into the bf16 row features, so no post-matmul scale.
    sim = jnp.dot(feat_row_ref[...], feat_colT_ref[...],
                  preferred_element_type=jnp.float32)            # (TB, TC) f32

    lab_r = lab_row_ref[...]                                     # (TB, 1) int32
    lab_c = lab_col_ref[...]                                     # (1, TC) int32
    valid_r = lab_r != -1
    valid_c = lab_c != -1

    row_idx = i * tb + lax.broadcasted_iota(jnp.int32, (tb, 1), 0)
    col_idx = j * tc + lax.broadcasted_iota(jnp.int32, (1, tc), 1)
    not_diag = row_idx != col_idx                                # -> (TB, TC)
    real_c = col_idx < b_real                                    # (1, TC)

    # open_mask * logits_mask, with the dynamic margin fused into one select:
    #   sim - (base_margin + beta*(1-sim)) = sim*(1+beta) - (base_margin+beta)
    margin_applied = (~valid_r | ~valid_c) & not_diag
    sim_m = jnp.where(margin_applied,
                      sim * (1.0 + beta) - (base_margin + beta),
                      sim)

    # Positive-pair mask (includes the diagonal, both labels valid, real column).
    pos = (lab_r == lab_c) & valid_r & valid_c & real_c

    s1_part = jnp.where(pos, sim_m, 0.0)                         # mask * sim_m
    s2_part = jnp.where(pos, 1.0, 0.0)                           # mask
    s3_part = jnp.where(not_diag & real_c, jnp.exp(sim_m), 0.0)  # exp * logits_mask

    # Lane-fold (TB, TC) -> (TB, 128) with 128-aligned VALU adds; the cross-lane
    # XLU reduction runs only once per row tile (in the finalize below).
    def lane_fold(x):
        acc = x[:, 0:128]
        for c in range(1, tc // 128):
            acc = acc + x[:, c * 128:(c + 1) * 128]
        return acc

    s1_ref[...] += lane_fold(s1_part)
    s2_ref[...] += lane_fold(s2_part)
    s3_ref[...] += lane_fold(s3_part)

    @pl.when(j == pl.num_programs(1) - 1)
    def _finalize():
        s1 = jnp.sum(s1_ref[...], axis=1, keepdims=True)         # (TB, 1)
        s2 = jnp.sum(s2_ref[...], axis=1, keepdims=True)
        s3 = jnp.sum(s3_ref[...], axis=1, keepdims=True)
        # mean_log_prob_pos = (S1 - S2*log(S3+eps)) / (S2+eps); exact division.
        out_ref[...] = (s1 - s2 * jnp.log(s3 + eps)) / (s2 + eps)


def _pick_tile(n, pref, align):
    """Largest multiple of `align` that is <= pref and divides n (n % 128 == 0)."""
    t = max(align, min(pref, n))
    t -= t % align
    while n % t:
        t -= align
    return t


def supcon_loss_dynamic_margin(features, labels,
                               temperature=0.13, base_margin=0.0, beta=0.6,
                               eps=1e-8, row_block=128, col_block=256):
    """features: [B, D] (any float dtype), labels: [B] int (-1 marks 'open')."""
    B, D = features.shape

    # ---- One-time prologue (pure JAX): normalize, fold 1/T, cast bf16. ----
    f32 = features.astype(jnp.float32)
    fn = f32 * lax.rsqrt(jnp.sum(f32 * f32, axis=1, keepdims=True) + 1e-24)
    feat_row = (fn * (1.0 / float(temperature))).astype(jnp.bfloat16)   # (B, D)
    feat_colT = fn.astype(jnp.bfloat16).T                               # (D, B)
    lab = labels.astype(jnp.int32)

    # ---- Pad B to a multiple of 128; padded rows/cols masked in-kernel. ----
    b_pad = ((B + 127) // 128) * 128
    pad = b_pad - B
    if pad:
        feat_row = jnp.pad(feat_row, ((0, pad), (0, 0)))
        feat_colT = jnp.pad(feat_colT, ((0, 0), (0, pad)))
        lab = jnp.pad(lab, (0, pad), constant_values=-2)   # never matches, not 'open'

    lab_r2d = lab.reshape(b_pad, 1)
    lab_c2d = lab.reshape(1, b_pad)

    tb = _pick_tile(b_pad, row_block, 8)      # sublane-aligned row tile
    tc = _pick_tile(b_pad, col_block, 128)    # lane-aligned column tile
    grid = (b_pad // tb, b_pad // tc)

    kernel = functools.partial(
        _supcon_kernel,
        base_margin=float(base_margin), beta=float(beta), eps=float(eps),
        tb=tb, tc=tc, b_real=B,
    )

    per_row = pl.pallas_call(
        kernel,
        out_shape=jax.ShapeDtypeStruct((b_pad, 1), jnp.float32),
        grid_spec=pltpu.PrefetchScalarGridSpec(
            num_scalar_prefetch=0,
            grid=grid,
            in_specs=[
                pl.BlockSpec((tb, D), lambda i, j: (i, 0)),   # row features (bf16, pre-scaled)
                pl.BlockSpec((D, tc), lambda i, j: (0, j)),   # col features, transposed (bf16)
                pl.BlockSpec((tb, 1), lambda i, j: (i, 0)),   # row labels
                pl.BlockSpec((1, tc), lambda i, j: (0, j)),   # col labels
            ],
            out_specs=pl.BlockSpec((tb, 1), lambda i, j: (i, 0)),
            scratch_shapes=[
                pltpu.VMEM((tb, 128), jnp.float32),   # S1: sum mask*sim_m (lane-folded)
                pltpu.VMEM((tb, 128), jnp.float32),   # S2: sum mask
                pltpu.VMEM((tb, 128), jnp.float32),   # S3: sum exp(sim_m)*offdiag
            ],
        ),
        compiler_params=pltpu.CompilerParams(
            dimension_semantics=("parallel", "arbitrary"),
            vmem_limit_bytes=48 * 1024 * 1024),
    )(feat_row, feat_colT, lab_r2d, lab_c2d)

    # Final reduction over the B real rows (tiny; done in the wrapper).
    return -jnp.mean(per_row[:B, 0])


def _reference_loss(features, labels, temperature=0.13, base_margin=0.0,
                    beta=0.6, eps=1e-8):
    # Pure-JAX f32 reference mirroring the PyTorch module.
    B = features.shape[0]
    f = features.astype(jnp.float32)
    f = f / jnp.maximum(jnp.linalg.norm(f, axis=1, keepdims=True), 1e-12)
    sim = (f @ f.T) / temperature
    lab = labels.reshape(-1, 1)
    valid = (lab != -1).astype(jnp.float32)
    mask = (lab == lab.T).astype(jnp.float32) * (valid @ valid.T)
    logits_mask = 1.0 - jnp.eye(B, dtype=jnp.float32)
    open_mask = jnp.clip((lab == -1).astype(jnp.float32)
                         + (lab.T == -1).astype(jnp.float32), 0.0, 1.0) * logits_mask
    dyn = base_margin + beta * (1.0 - sim)
    sim = sim - open_mask * dyn
    exp_sim = jnp.exp(sim) * logits_mask
    log_prob = sim - jnp.log(exp_sim.sum(1, keepdims=True) + eps)
    mlpp = (mask * log_prob).sum(1) / (mask.sum(1) + eps)
    return -mlpp.mean()


if __name__ == "__main__":
    key = jax.random.PRNGKey(0)

    # Small demo consistent with the module: B=8 embeddings of dim 32.
    B, D = 8, 32
    features = jax.random.normal(key, (B, D), dtype=jnp.float32)
    labels = jnp.array([0, 1, 0, 2, -1, 1, 2, -1], dtype=jnp.int32)

    loss = jax.block_until_ready(supcon_loss_dynamic_margin(features, labels))
    ref = jax.block_until_ready(_reference_loss(features, labels))
    assert jnp.isfinite(loss), "kernel produced non-finite loss"
    assert jnp.allclose(loss, ref, rtol=5e-2, atol=5e-2), (loss, ref)

    # Multi-tile check: unaligned B (exercises padding + real-column masking),
    # bf16 input, 2x2 grid (parallel row tiles + streaming column reduction).
    k1, k2 = jax.random.split(key)
    B2, D2 = 200, 64
    feats2 = jax.random.normal(k1, (B2, D2), dtype=jnp.bfloat16)
    labels2 = jax.random.randint(k2, (B2,), -1, 8, dtype=jnp.int32)
    loss2 = jax.block_until_ready(
        supcon_loss_dynamic_margin(feats2, labels2,
                                   row_block=128, col_block=128))
    ref2 = jax.block_until_ready(_reference_loss(feats2, labels2))
    assert jnp.isfinite(loss2), "kernel produced non-finite loss (tiled case)"
    assert jnp.allclose(loss2, ref2, rtol=5e-2, atol=5e-2), (loss2, ref2)

    print("KERNEL_OK")
</pallas_src>

<mosaic_0001>
module attributes {stable_mosaic.version = 11 : i64} {
  func.func @_supcon_kernel(%arg0: i32, %arg1: i32, %arg2: memref<128x32xbf16, #tpu.memory_space<vmem>>, %arg3: memref<32x128xbf16, #tpu.memory_space<vmem>>, %arg4: memref<128x1xi32, #tpu.memory_space<vmem>>, %arg5: memref<1x128xi32, #tpu.memory_space<vmem>>, %arg6: memref<128x1xf32, #tpu.memory_space<vmem>>, %arg7: memref<128x128xf32, #tpu.memory_space<vmem>>, %arg8: memref<128x128xf32, #tpu.memory_space<vmem>>, %arg9: memref<128x128xf32, #tpu.memory_space<vmem>>) attributes {dimension_semantics = [#tpu.dimension_semantics<parallel>, #tpu.dimension_semantics<arbitrary>], iteration_bounds = array<i64: 1, 1>, scalar_prefetch = 0 : i64, scratch_operands = 3 : i64, tpu.core_type = #tpu.core_type<tc>, window_params = [{transform_indices = @transform_0, window_bounds = array<i64: 128, 32>}, {transform_indices = @transform_1, window_bounds = array<i64: 32, 128>}, {transform_indices = @transform_2, window_bounds = array<i64: 128, 1>}, {transform_indices = @transform_3, window_bounds = array<i64: 1, 128>}, {transform_indices = @transform_4, window_bounds = array<i64: 128, 1>}]} {
    %c0_i32 = arith.constant 0 : i32
    %0 = arith.cmpi eq, %arg1, %c0_i32 : i32
    %1 = arith.extui %0 : i1 to i32
    %c0_i32_0 = arith.constant 0 : i32
    %2 = arith.cmpi ne, %1, %c0_i32_0 : i32
    scf.if %2 {
      %cst_32 = arith.constant 0.000000e+00 : f32
      %67 = vector.broadcast %cst_32 : f32 to vector<128x128xf32>
      %c0_33 = arith.constant 0 : index
      %c0_34 = arith.constant 0 : index
      %68 = vector.load %arg7[%c0_33, %c0_34] : memref<128x128xf32, #tpu.memory_space<vmem>>, vector<128x128xf32>
      tpu.vector_store %arg7[%c0_33, %c0_34], %67 {strides = array<i32>} : memref<128x128xf32, #tpu.memory_space<vmem>>, vector<128x128xf32>,
      %cst_35 = arith.constant 0.000000e+00 : f32
      %69 = vector.broadcast %cst_35 : f32 to vector<128x128xf32>
      %c0_36 = arith.constant 0 : index
      %c0_37 = arith.constant 0 : index
      %70 = vector.load %arg8[%c0_36, %c0_37] : memref<128x128xf32, #tpu.memory_space<vmem>>, vector<128x128xf32>
      tpu.vector_store %arg8[%c0_36, %c0_37], %69 {strides = array<i32>} : memref<128x128xf32, #tpu.memory_space<vmem>>, vector<128x128xf32>,
      %cst_38 = arith.constant 0.000000e+00 : f32
      %71 = vector.broadcast %cst_38 : f32 to vector<128x128xf32>
      %c0_39 = arith.constant 0 : index
      %c0_40 = arith.constant 0 : index
      %72 = vector.load %arg9[%c0_39, %c0_40] : memref<128x128xf32, #tpu.memory_space<vmem>>, vector<128x128xf32>
      tpu.vector_store %arg9[%c0_39, %c0_40], %71 {strides = array<i32>} : memref<128x128xf32, #tpu.memory_space<vmem>>, vector<128x128xf32>,
    } else {
    }
    %c0 = arith.constant 0 : index
    %c0_1 = arith.constant 0 : index
    %3 = vector.load %arg2[%c0, %c0_1] : memref<128x32xbf16, #tpu.memory_space<vmem>>, vector<128x32xbf16>
    %c0_2 = arith.constant 0 : index
    %c0_3 = arith.constant 0 : index
    %4 = vector.load %arg3[%c0_2, %c0_3] : memref<32x128xbf16, #tpu.memory_space<vmem>>, vector<32x128xbf16>
    %cst = arith.constant dense<0.000000e+00> : vector<128x128xf32>
    %5 = tpu.matmul %3, %4, %cst {dimension_numbers = #tpu.dot_dimension_numbers<[1], [0], [0], [1], [0, 0, 1, 1], [], []>} : vector<128x32xbf16>, vector<32x128xbf16>, vector<128x128xf32> -> vector<128x128xf32>
    %c0_4 = arith.constant 0 : index
    %c0_5 = arith.constant 0 : index
    %6 = vector.load %arg4[%c0_4, %c0_5] : memref<128x1xi32, #tpu.memory_space<vmem>>, vector<128x1xi32>
    %c0_6 = arith.constant 0 : index
    %c0_7 = arith.constant 0 : index
    %7 = vector.load %arg5[%c0_6, %c0_7] : memref<1x128xi32, #tpu.memory_space<vmem>>, vector<1x128xi32>
    %c-1_i32 = arith.constant -1 : i32
    %8 = vector.broadcast %c-1_i32 : i32 to vector<128x1xi32>
    %9 = arith.cmpi ne, %6, %8 : vector<128x1xi32>
    %c-1_i32_8 = arith.constant -1 : i32
    %10 = vector.broadcast %c-1_i32_8 : i32 to vector<1x128xi32>
    %11 = arith.cmpi ne, %7, %10 : vector<1x128xi32>
    %c128_i32 = arith.constant 128 : i32
    %12 = arith.muli %arg0, %c128_i32 : i32
    %13 = tpu.iota {dimensions = array<i32: 0>} : vector<128x1xi32>
    %14 = vector.broadcast %12 : i32 to vector<128x1xi32>
    %15 = arith.addi %14, %13 : vector<128x1xi32>
    %c128_i32_9 = arith.constant 128 : i32
    %16 = arith.muli %arg1, %c128_i32_9 : i32
    %17 = tpu.iota {dimensions = array<i32: 1>} : vector<1x128xi32>
    %18 = vector.broadcast %16 : i32 to vector<1x128xi32>
    %19 = arith.addi %18, %17 : vector<1x128xi32>
    %20 = vector.broadcast %15 : vector<128x1xi32> to vector<128x128xi32>
    %21 = vector.broadcast %19 : vector<1x128xi32> to vector<128x128xi32>
    %22 = arith.cmpi ne, %20, %21 : vector<128x128xi32>
    %c8_i32 = arith.constant 8 : i32
    %23 = vector.broadcast %c8_i32 : i32 to vector<1x128xi32>
    %24 = arith.cmpi slt, %19, %23 : vector<1x128xi32>
    %cst_10 = arith.constant dense<true> : vector<128x1xi1>
    %25 = arith.xori %9, %cst_10 : vector<128x1xi1>
    %cst_11 = arith.constant dense<true> : vector<1x128xi1>
    %26 = arith.xori %11, %cst_11 : vector<1x128xi1>
    %27 = vector.broadcast %25 : vector<128x1xi1> to vector<128x128xi1>
    %28 = vector.broadcast %26 : vector<1x128xi1> to vector<128x128xi1>
    %29 = arith.ori %27, %28 : vector<128x128xi1>
    %30 = arith.andi %29, %22 : vector<128x128xi1>
    %cst_12 = arith.constant 1.600000e+00 : f32
    %31 = vector.broadcast %cst_12 : f32 to vector<128x128xf32>
    %32 = arith.mulf %5, %31 : vector<128x128xf32>
    %cst_13 = arith.constant 6.000000e-01 : f32
    %33 = vector.broadcast %cst_13 : f32 to vector<128x128xf32>
    %34 = arith.subf %32, %33 : vector<128x128xf32>
    %35 = arith.select %30, %34, %5 : vector<128x128xi1>, vector<128x128xf32>
    %36 = vector.broadcast %6 : vector<128x1xi32> to vector<128x128xi32>
    %37 = vector.broadcast %7 : vector<1x128xi32> to vector<128x128xi32>
    %38 = arith.cmpi eq, %36, %37 : vector<128x128xi32>
    %39 = vector.broadcast %9 : vector<128x1xi1> to vector<128x128xi1>
    %40 = arith.andi %38, %39 : vector<128x128xi1>
    %41 = vector.broadcast %11 : vector<1x128xi1> to vector<128x128xi1>
    %42 = arith.andi %40, %41 : vector<128x128xi1>
    %43 = vector.broadcast %24 : vector<1x128xi1> to vector<128x128xi1>
    %44 = arith.andi %42, %43 : vector<128x128xi1>
    %cst_14 = arith.constant 0.000000e+00 : f32
    %45 = vector.broadcast %cst_14 : f32 to vector<128x128xf32>
    %46 = arith.select %44, %35, %45 : vector<128x128xi1>, vector<128x128xf32>
    %cst_15 = arith.constant 1.000000e+00 : f32
    %cst_16 = arith.constant 0.000000e+00 : f32
    %47 = vector.broadcast %cst_15 : f32 to vector<128x128xf32>
    %48 = vector.broadcast %cst_16 : f32 to vector<128x128xf32>
    %49 = arith.select %44, %47, %48 : vector<128x128xi1>, vector<128x128xf32>
    %50 = vector.broadcast %24 : vector<1x128xi1> to vector<128x128xi1>
    %51 = arith.andi %22, %50 : vector<128x128xi1>
    %52 = math.exp %35 : vector<128x128xf32>
    %cst_17 = arith.constant 0.000000e+00 : f32
    %53 = vector.broadcast %cst_17 : f32 to vector<128x128xf32>
    %54 = arith.select %51, %52, %53 : vector<128x128xi1>, vector<128x128xf32>
    %c0_18 = arith.constant 0 : index
    %c0_19 = arith.constant 0 : index
    %55 = vector.load %arg7[%c0_18, %c0_19] : memref<128x128xf32, #tpu.memory_space<vmem>>, vector<128x128xf32>
    %56 = arith.addf %55, %46 : vector<128x128xf32>
    %c0_20 = arith.constant 0 : index
    %c0_21 = arith.constant 0 : index
    %57 = vector.load %arg7[%c0_20, %c0_21] : memref<128x128xf32, #tpu.memory_space<vmem>>, vector<128x128xf32>
    tpu.vector_store %arg7[%c0_20, %c0_21], %56 {strides = array<i32>} : memref<128x128xf32, #tpu.memory_space<vmem>>, vector<128x128xf32>,
    %c0_22 = arith.constant 0 : index
    %c0_23 = arith.constant 0 : index
    %58 = vector.load %arg8[%c0_22, %c0_23] : memref<128x128xf32, #tpu.memory_space<vmem>>, vector<128x128xf32>
    %59 = arith.addf %58, %49 : vector<128x128xf32>
    %c0_24 = arith.constant 0 : index
    %c0_25 = arith.constant 0 : index
    %60 = vector.load %arg8[%c0_24, %c0_25] : memref<128x128xf32, #tpu.memory_space<vmem>>, vector<128x128xf32>
    tpu.vector_store %arg8[%c0_24, %c0_25], %59 {strides = array<i32>} : memref<128x128xf32, #tpu.memory_space<vmem>>, vector<128x128xf32>,
    %c0_26 = arith.constant 0 : index
    %c0_27 = arith.constant 0 : index
    %61 = vector.load %arg9[%c0_26, %c0_27] : memref<128x128xf32, #tpu.memory_space<vmem>>, vector<128x128xf32>
    %62 = arith.addf %61, %54 : vector<128x128xf32>
    %c0_28 = arith.constant 0 : index
    %c0_29 = arith.constant 0 : index
    %63 = vector.load %arg9[%c0_28, %c0_29] : memref<128x128xf32, #tpu.memory_space<vmem>>, vector<128x128xf32>
    tpu.vector_store %arg9[%c0_28, %c0_29], %62 {strides = array<i32>} : memref<128x128xf32, #tpu.memory_space<vmem>>, vector<128x128xf32>,
    %c0_i32_30 = arith.constant 0 : i32
    %64 = arith.cmpi eq, %arg1, %c0_i32_30 : i32
    %65 = arith.extui %64 : i1 to i32
    %c0_i32_31 = arith.constant 0 : i32
    %66 = arith.cmpi ne, %65, %c0_i32_31 : i32
    scf.if %66 {
      %c0_32 = arith.constant 0 : index
      %c0_33 = arith.constant 0 : index
      %67 = vector.load %arg7[%c0_32, %c0_33] : memref<128x128xf32, #tpu.memory_space<vmem>>, vector<128x128xf32>
      %cst_34 = arith.constant dense<0.000000e+00> : vector<128xf32>
      %68 = vector.multi_reduction <add>, %67, %cst_34 [1] : vector<128x128xf32> to vector<128xf32>
      %69 = vector.shape_cast %68 : vector<128xf32> to vector<128x1xf32>
      %c0_35 = arith.constant 0 : index
      %c0_36 = arith.constant 0 : index
      %70 = vector.load %arg8[%c0_35, %c0_36] : memref<128x128xf32, #tpu.memory_space<vmem>>, vector<128x128xf32>
      %cst_37 = arith.constant dense<0.000000e+00> : vector<128xf32>
      %71 = vector.multi_reduction <add>, %70, %cst_37 [1] : vector<128x128xf32> to vector<128xf32>
      %72 = vector.shape_cast %71 : vector<128xf32> to vector<128x1xf32>
      %c0_38 = arith.constant 0 : index
      %c0_39 = arith.constant 0 : index
      %73 = vector.load %arg9[%c0_38, %c0_39] : memref<128x128xf32, #tpu.memory_space<vmem>>, vector<128x128xf32>
      %cst_40 = arith.constant dense<0.000000e+00> : vector<128xf32>
      %74 = vector.multi_reduction <add>, %73, %cst_40 [1] : vector<128x128xf32> to vector<128xf32>
      %75 = vector.shape_cast %74 : vector<128xf32> to vector<128x1xf32>
      %cst_41 = arith.constant 9.99999993E-9 : f32
      %76 = vector.broadcast %cst_41 : f32 to vector<128x1xf32>
      %77 = arith.addf %75, %76 : vector<128x1xf32>
      %78 = math.log %77 : vector<128x1xf32>
      %79 = arith.mulf %72, %78 : vector<128x1xf32>
      %80 = arith.subf %69, %79 : vector<128x1xf32>
      %cst_42 = arith.constant 9.99999993E-9 : f32
      %81 = vector.broadcast %cst_42 : f32 to vector<128x1xf32>
      %82 = arith.addf %72, %81 : vector<128x1xf32>
      %83 = arith.divf %80, %82 : vector<128x1xf32>
      %c0_43 = arith.constant 0 : index
      %c0_44 = arith.constant 0 : index
      %84 = vector.load %arg6[%c0_43, %c0_44] : memref<128x1xf32, #tpu.memory_space<vmem>>, vector<128x1xf32>
      tpu.vector_store %arg6[%c0_43, %c0_44], %83 {strides = array<i32>} : memref<128x1xf32, #tpu.memory_space<vmem>>, vector<128x1xf32>,
    } else {
    }
    return
  }
  func.func @transform_0(%arg0: i32, %arg1: i32) -> (i32, i32) {
    %c0_i32 = arith.constant 0 : i32
    %c0_i32_0 = arith.constant 0 : i32
    return %arg0, %c0_i32 : i32, i32
  }
  func.func @transform_1(%arg0: i32, %arg1: i32) -> (i32, i32) {
    %c0_i32 = arith.constant 0 : i32
    %c0_i32_0 = arith.constant 0 : i32
    return %c0_i32, %arg1 : i32, i32
  }
  func.func @transform_2(%arg0: i32, %arg1: i32) -> (i32, i32) {
    %c0_i32 = arith.constant 0 : i32
    %c0_i32_0 = arith.constant 0 : i32
    return %arg0, %c0_i32 : i32, i32
  }
  func.func @transform_3(%arg0: i32, %arg1: i32) -> (i32, i32) {
    %c0_i32 = arith.constant 0 : i32
    %c0_i32_0 = arith.constant 0 : i32
    return %c0_i32, %arg1 : i32, i32
  }
  func.func @transform_4(%arg0: i32, %arg1: i32) -> (i32, i32) {
    %c0_i32 = arith.constant 0 : i32
    %c0_i32_0 = arith.constant 0 : i32
    return %arg0, %c0_i32 : i32, i32
  }
}

</mosaic_0001>

<llo_original>
// kernel: tpu_custom_call.1
$region0: #{tpu_custom_call.1}
  #allocation0 [shape = 'u32[]', space=smem, size = 0x4, offset = 0x4, fixed_abs, tag = 'smem constant byte address 0x4 - core index']
  #allocation1 [shape = 'u32[144,128]{1,0:T(1,128)}', space=vmem, size = 0x12000, scoped, tag = 'internal scratch']
  #allocation2 [shape = 'f32[128,128]{1,0:T(8,128)}', space=vmem, size = 0x10000, scoped, tag = 'scratch operand']
  #allocation3 [shape = 'f32[128,128]{1,0:T(8,128)}', space=vmem, size = 0x10000, scoped, tag = 'scratch operand']
  #allocation4 [shape = 'f32[128,128]{1,0:T(8,128)}', space=vmem, size = 0x10000, scoped, tag = 'scratch operand']
  %s0 = inlined_call_operand.vmem [shape: bf16[128,32], index: 0, kind: input, shape index: {}]
  %s1 = inlined_call_operand.vmem [shape: bf16[32,128], index: 1, kind: input, shape index: {}]
  %s2 = inlined_call_operand.vmem [shape: s32[128,1], index: 2, kind: input, shape index: {}]
  %s3 = inlined_call_operand.vmem [shape: s32[1,128], index: 3, kind: input, shape index: {}]
  %s4 = inlined_call_operand.vmem [shape: f32[128,1], index: 4, kind: output, shape index: {}]
  %s5 = sld [smem:[#allocation0]]
  $region34: #{tpu_custom_call.1} parent=0
    _
  %s7 = ssub.s32 1, %s5
  %s8 = scalar_select 0, %s7, %s5
  // Predicated region
  $region2: #{tpu_custom_call.1} parent=0 // pred_check
    _
  $region3: #{tpu_custom_call.1} parent=0 // pred_check_branch
    %10 = sbr.rel (0) target = $region5
  $region4: #{tpu_custom_call.1} parent=0 // pred_region
    _
  $region5: #{tpu_custom_call.1} parent=0 // pred_fallthru
    _
  // Predicated region
  $region6: #{tpu_custom_call.1} parent=0 // pred_check
    _
  $region7: #{tpu_custom_call.1} parent=0 // pred_check_branch
    %12 = sbr.rel (0) target = $region9
  $region8: #{tpu_custom_call.1} parent=0 // pred_region
    _
  $region9: #{tpu_custom_call.1} parent=0 // pred_fallthru
    _
  // Predicated region
  $region10: #{tpu_custom_call.1} parent=0 // pred_check
    _
  $region11: #{tpu_custom_call.1} parent=0 // pred_check_branch
    %14 = sbr.rel (0) target = $region13
  $region12: #{tpu_custom_call.1} parent=0 // pred_region
    _
  $region13: #{tpu_custom_call.1} parent=0 // pred_fallthru
    _
  // Predicated region
  $region14: #{tpu_custom_call.1} parent=0 // pred_check
    _
  $region15: #{tpu_custom_call.1} parent=0 // pred_check_branch
    %16 = sbr.rel (0) target = $region17
  $region16: #{tpu_custom_call.1} parent=0 // pred_region
    _
  $region17: #{tpu_custom_call.1} parent=0 // pred_fallthru
    _
  %p18 = scmp.eq.s32.totalorder 0, 0
  // Predicated region
  $region18: #{tpu_custom_call.1} parent=0 // pred_check
    %p19 = pneg %p18
  $region19: #{tpu_custom_call.1} parent=0 // pred_check_branch
    %21 = sbr.rel (%p19) target = $region21
  $region20: #{tpu_custom_call.1} parent=0 // pred_region
    %22 = vst [vmem:[#allocation2] sm:$0xff] 0.0
    %23 = vst [vmem:[#allocation2 + $0x8] sm:$0xff] 0.0
    %24 = vst [vmem:[#allocation2 + $0x10] sm:$0xff] 0.0
    %25 = vst [vmem:[#allocation2 + $0x18] sm:$0xff] 0.0
    %26 = vst [vmem:[#allocation2 + $0x20] sm:$0xff] 0.0
    %27 = vst [vmem:[#allocation2 + $0x28] sm:$0xff] 0.0
    %28 = vst [vmem:[#allocation2 + $0x30] sm:$0xff] 0.0
    %29 = vst [vmem:[#allocation2 + $0x38] sm:$0xff] 0.0
    %30 = vst [vmem:[#allocation2 + $0x40] sm:$0xff] 0.0
    %31 = vst [vmem:[#allocation2 + $0x48] sm:$0xff] 0.0
    %32 = vst [vmem:[#allocation2 + $0x50] sm:$0xff] 0.0
    %33 = vst [vmem:[#allocation2 + $0x58] sm:$0xff] 0.0
    %34 = vst [vmem:[#allocation2 + $0x60] sm:$0xff] 0.0
    %35 = vst [vmem:[#allocation2 + $0x68] sm:$0xff] 0.0
    %36 = vst [vmem:[#allocation2 + $0x70] sm:$0xff] 0.0
    %37 = vst [vmem:[#allocation2 + $0x78] sm:$0xff] 0.0
    %38 = vst [vmem:[#allocation3] sm:$0xff] 0.0
    %39 = vst [vmem:[#allocation3 + $0x8] sm:$0xff] 0.0
    %40 = vst [vmem:[#allocation3 + $0x10] sm:$0xff] 0.0
    %41 = vst [vmem:[#allocation3 + $0x18] sm:$0xff] 0.0
    %42 = vst [vmem:[#allocation3 + $0x20] sm:$0xff] 0.0
    %43 = vst [vmem:[#allocation3 + $0x28] sm:$0xff] 0.0
    %44 = vst [vmem:[#allocation3 + $0x30] sm:$0xff] 0.0
    %45 = vst [vmem:[#allocation3 + $0x38] sm:$0xff] 0.0
    %46 = vst [vmem:[#allocation3 + $0x40] sm:$0xff] 0.0
    %47 = vst [vmem:[#allocation3 + $0x48] sm:$0xff] 0.0
    %48 = vst [vmem:[#allocation3 + $0x50] sm:$0xff] 0.0
    %49 = vst [vmem:[#allocation3 + $0x58] sm:$0xff] 0.0
    %50 = vst [vmem:[#allocation3 + $0x60] sm:$0xff] 0.0
    %51 = vst [vmem:[#allocation3 + $0x68] sm:$0xff] 0.0
    %52 = vst [vmem:[#allocation3 + $0x70] sm:$0xff] 0.0
    %53 = vst [vmem:[#allocation3 + $0x78] sm:$0xff] 0.0
    %54 = vst [vmem:[#allocation4] sm:$0xff] 0.0
    %55 = vst [vmem:[#allocation4 + $0x8] sm:$0xff] 0.0
    %56 = vst [vmem:[#allocation4 + $0x10] sm:$0xff] 0.0
    %57 = vst [vmem:[#allocation4 + $0x18] sm:$0xff] 0.0
    %58 = vst [vmem:[#allocation4 + $0x20] sm:$0xff] 0.0
    %59 = vst [vmem:[#allocation4 + $0x28] sm:$0xff] 0.0
    %60 = vst [vmem:[#allocation4 + $0x30] sm:$0xff] 0.0
    %61 = vst [vmem:[#allocation4 + $0x38] sm:$0xff] 0.0
    %62 = vst [vmem:[#allocation4 + $0x40] sm:$0xff] 0.0
    %63 = vst [vmem:[#allocation4 + $0x48] sm:$0xff] 0.0
    %64 = vst [vmem:[#allocation4 + $0x50] sm:$0xff] 0.0
    %65 = vst [vmem:[#allocation4 + $0x58] sm:$0xff] 0.0
    %66 = vst [vmem:[#allocation4 + $0x60] sm:$0xff] 0.0
    %67 = vst [vmem:[#allocation4 + $0x68] sm:$0xff] 0.0
    %68 = vst [vmem:[#allocation4 + $0x70] sm:$0xff] 0.0
    %69 = vst [vmem:[#allocation4 + $0x78] sm:$0xff] 0.0
  $region21: #{tpu_custom_call.1} parent=0 // pred_fallthru
    _
  %v70 = vld [vmem:[%s0] sm:$0xf]
  %v71 = vld [vmem:[%s0 + $0x4] sm:$0xf]
  %v72 = vld [vmem:[%s0 + $0x8] sm:$0xf]
  %v73 = vld [vmem:[%s0 + $0xc] sm:$0xf]
  %v74 = vld [vmem:[%s0 + $0x10] sm:$0xf]
  %v75 = vld [vmem:[%s0 + $0x14] sm:$0xf]
  %v76 = vld [vmem:[%s0 + $0x18] sm:$0xf]
  %v77 = vld [vmem:[%s0 + $0x1c] sm:$0xf]
  %v78 = vld [vmem:[%s0 + $0x20] sm:$0xf]
  %v79 = vld [vmem:[%s0 + $0x24] sm:$0xf]
  %v80 = vld [vmem:[%s0 + $0x28] sm:$0xf]
  %v81 = vld [vmem:[%s0 + $0x2c] sm:$0xf]
  %v82 = vld [vmem:[%s0 + $0x30] sm:$0xf]
  %v83 = vld [vmem:[%s0 + $0x34] sm:$0xf]
  %v84 = vld [vmem:[%s0 + $0x38] sm:$0xf]
  %v85 = vld [vmem:[%s0 + $0x3c] sm:$0xf]
  %v86 = vld [vmem:[%s1] sm:$0xf]
  %v87 = vld [vmem:[%s1 + $0x4] sm:$0xf]
  %v88 = vld [vmem:[%s1 + $0x8] sm:$0xf]
  %v89 = vld [vmem:[%s1 + $0xc] sm:$0xf]
  %v106 = vunpack.c.l.b16 %v70
  %v107 = vunpack.c.l.b16 %v71
  %v108 = vunpack.c.l.b16 %v72
  %v109 = vunpack.c.l.b16 %v73
  %v110 = vunpack.c.l.b16 %v74
  %v111 = vunpack.c.l.b16 %v75
  %v112 = vunpack.c.l.b16 %v76
  %v113 = vunpack.c.l.b16 %v77
  %v114 = vunpack.c.l.b16 %v78
  %v115 = vunpack.c.l.b16 %v79
  %v116 = vunpack.c.l.b16 %v80
  %v117 = vunpack.c.l.b16 %v81
  %v118 = vunpack.c.l.b16 %v82
  %v119 = vunpack.c.l.b16 %v83
  %v120 = vunpack.c.l.b16 %v84
  %v121 = vunpack.c.l.b16 %v85
  %v122 = vpack.c.b16 %v107, %v106
  %v123 = vpack.c.b16 %v109, %v108
  %v124 = vpack.c.b16 %v111, %v110
  %v125 = vpack.c.b16 %v113, %v112
  %v126 = vpack.c.b16 %v115, %v114
  %v127 = vpack.c.b16 %v117, %v116
  %v128 = vpack.c.b16 %v119, %v118
  %v129 = vpack.c.b16 %v121, %v120
  %v134 = vunpack.c.l.b16 %v86
  %v135 = vunpack.c.l.b16 %v87
  %v136 = vunpack.c.l.b16 %v88
  %v137 = vunpack.c.l.b16 %v89
  %v138 = vpack.c.b16 %v135, %v134
  %v139 = vpack.c.b16 %v137, %v136
  %vm142 = vcmask 261120
  %v144 = vsel %vm142, %v122, 0
  %v147 = vsel %vm142, %v123, 0
  %v150 = vsel %vm142, %v124, 0
  %v153 = vsel %vm142, %v125, 0
  %v156 = vsel %vm142, %v126, 0
  %v159 = vsel %vm142, %v127, 0
  %v162 = vsel %vm142, %v128, 0
  %v165 = vsel %vm142, %v129, 0
  %167 = vmatprep.subr.bf16.mxu0 0
  %168 = vmatpush1.bf16.msra.mxu0 0
  %169 = vmatprep.subr.bf16.mxu0 0
  %170 = vmatpush1.bf16.msra.mxu0 0
  %171 = vmatprep.subr.bf16.mxu0 0
  %172 = vmatpush1.bf16.msra.mxu0 0
  %173 = vmatprep.subr.bf16.mxu0 0
  %174 = vmatpush1.bf16.msra.mxu0 0
  %175 = vmatprep.subr.bf16.mxu0 0
  %176 = vmatpush1.bf16.msra.mxu0 0
  %177 = vmatprep.subr.bf16.mxu0 0
  %178 = vmatpush1.bf16.msra.mxu0 0
  %179 = vmatprep.subr.bf16.mxu0 0
  %180 = vmatpush1.bf16.msra.mxu0 %v139
  %181 = vmatprep.subr.bf16.mxu0 0
  %182 = vmatpush1.bf16.msra.mxu0 %v138
  %183 = vmatprep.subr.bf16.mxu0 0
  %184 = vmatpush2.bf16.msra.mxu0 0
  %185 = vmatprep.subr.bf16.mxu0 0
  %186 = vmatpush2.bf16.msra.mxu0 0
  %187 = vmatprep.subr.bf16.mxu0 0
  %188 = vmatpush2.bf16.msra.mxu0 0
  %189 = vmatprep.subr.bf16.mxu0 0
  %190 = vmatpush2.bf16.msra.mxu0 0
  %191 = vmatprep.subr.bf16.mxu0 0
  %192 = vmatpush2.bf16.msra.mxu0 0
  %193 = vmatprep.subr.bf16.mxu0 0
  %194 = vmatpush2.bf16.msra.mxu0 0
  %195 = vmatprep.subr.bf16.mxu0 0
  %196 = vmatpush2.bf16.msra.mxu0 0
  %197 = vmatprep.subr.bf16.mxu0 0
  %198 = vmatpush2.bf16.msra.mxu0 0
  %199 = vmatprep.mubr.bf16.mxu0 0
  %200 = vmatmul.mubr.bf16.gmra.mxu0 %v144
  %v201 = vpop.f32.mrf.mxu0
  %v202 = vadd.f32 0.0, %v201
  %v203 = vpop.f32.mrf.mxu0
  %v204 = vpop.f32.mrf.mxu0
  %v205 = vadd.f32 0.0, %v204
  %v206 = vpop.f32.mrf.mxu0
  %207 = vmatprep.mubr.bf16.mxu0 0
  %208 = vmatmul.mubr.bf16.gmra.mxu0 %v147
  %v209 = vpop.f32.mrf.mxu0
  %v210 = vadd.f32 0.0, %v209
  %v211 = vpop.f32.mrf.mxu0
  %v212 = vpop.f32.mrf.mxu0
  %v213 = vadd.f32 0.0, %v212
  %v214 = vpop.f32.mrf.mxu0
  %215 = vmatprep.mubr.bf16.mxu0 0
  %216 = vmatmul.mubr.bf16.gmra.mxu0 %v150
  %v217 = vpop.f32.mrf.mxu0
  %v218 = vadd.f32 0.0, %v217
  %v219 = vpop.f32.mrf.mxu0
  %v220 = vpop.f32.mrf.mxu0
  %v221 = vadd.f32 0.0, %v220
  %v222 = vpop.f32.mrf.mxu0
  %223 = vmatprep.mubr.bf16.mxu0 0
  %224 = vmatmul.mubr.bf16.gmra.mxu0 %v153
  %v225 = vpop.f32.mrf.mxu0
  %v226 = vadd.f32 0.0, %v225
  %v227 = vpop.f32.mrf.mxu0
  %v228 = vpop.f32.mrf.mxu0
  %v229 = vadd.f32 0.0, %v228
  %v230 = vpop.f32.mrf.mxu0
  %231 = vmatprep.mubr.bf16.mxu0 0
  %232 = vmatmul.mubr.bf16.gmra.mxu0 %v156
  %v233 = vpop.f32.mrf.mxu0
  %v234 = vadd.f32 0.0, %v233
  %v235 = vpop.f32.mrf.mxu0
  %v236 = vpop.f32.mrf.mxu0
  %v237 = vadd.f32 0.0, %v236
  %v238 = vpop.f32.mrf.mxu0
  %239 = vmatprep.mubr.bf16.mxu0 0
  %240 = vmatmul.mubr.bf16.gmra.mxu0 %v159
  %v241 = vpop.f32.mrf.mxu0
  %v242 = vadd.f32 0.0, %v241
  %v243 = vpop.f32.mrf.mxu0
  %v244 = vpop.f32.mrf.mxu0
  %v245 = vadd.f32 0.0, %v244
  %v246 = vpop.f32.mrf.mxu0
  %247 = vmatprep.mubr.bf16.mxu0 0
  %248 = vmatmul.mubr.bf16.gmra.mxu0 %v162
  %v249 = vpop.f32.mrf.mxu0
  %v250 = vadd.f32 0.0, %v249
  %v251 = vpop.f32.mrf.mxu0
  %v252 = vpop.f32.mrf.mxu0
  %v253 = vadd.f32 0.0, %v252
  %v254 = vpop.f32.mrf.mxu0
  %255 = vmatprep.mubr.bf16.mxu0 0
  %256 = vmatmul.mubr.bf16.gmra.mxu0 %v165
  %v257 = vpop.f32.mrf.mxu0
  %v258 = vadd.f32 0.0, %v257
  %v259 = vpop.f32.mrf.mxu0
  %v260 = vpop.f32.mrf.mxu0
  %v261 = vadd.f32 0.0, %v260
  %v262 = vpop.f32.mrf.mxu0
  %263 = vdwg.mxu0
  %v264 = vld [vmem:[%s2] sm:$0xff]
  %v265 = vld [vmem:[%s2 + $0x8] sm:$0xff]
  %v266 = vld [vmem:[%s2 + $0x10] sm:$0xff]
  %v267 = vld [vmem:[%s2 + $0x18] sm:$0xff]
  %v268 = vld [vmem:[%s2 + $0x20] sm:$0xff]
  %v269 = vld [vmem:[%s2 + $0x28] sm:$0xff]
  %v270 = vld [vmem:[%s2 + $0x30] sm:$0xff]
  %v271 = vld [vmem:[%s2 + $0x38] sm:$0xff]
  %v272 = vld [vmem:[%s2 + $0x40] sm:$0xff]
  %v273 = vld [vmem:[%s2 + $0x48] sm:$0xff]
  %v274 = vld [vmem:[%s2 + $0x50] sm:$0xff]
  %v275 = vld [vmem:[%s2 + $0x58] sm:$0xff]
  %v276 = vld [vmem:[%s2 + $0x60] sm:$0xff]
  %v277 = vld [vmem:[%s2 + $0x68] sm:$0xff]
  %v278 = vld [vmem:[%s2 + $0x70] sm:$0xff]
  %v279 = vld [vmem:[%s2 + $0x78] sm:$0xff]
  %v280 = vld [vmem:[%s3] sm:$0x1]
  %vm281 = vcmp.ne.s32.totalorder %v264, 4294967295
  %vm282 = vcmp.ne.s32.totalorder %v265, 4294967295
  %vm283 = vcmp.ne.s32.totalorder %v266, 4294967295
  %vm284 = vcmp.ne.s32.totalorder %v267, 4294967295
  %vm285 = vcmp.ne.s32.totalorder %v268, 4294967295
  %vm286 = vcmp.ne.s32.totalorder %v269, 4294967295
  %vm287 = vcmp.ne.s32.totalorder %v270, 4294967295
  %vm288 = vcmp.ne.s32.totalorder %v271, 4294967295
  %vm289 = vcmp.ne.s32.totalorder %v272, 4294967295
  %vm290 = vcmp.ne.s32.totalorder %v273, 4294967295
  %vm291 = vcmp.ne.s32.totalorder %v274, 4294967295
  %vm292 = vcmp.ne.s32.totalorder %v275, 4294967295
  %vm293 = vcmp.ne.s32.totalorder %v276, 4294967295
  %vm294 = vcmp.ne.s32.totalorder %v277, 4294967295
  %vm295 = vcmp.ne.s32.totalorder %v278, 4294967295
  %vm296 = vcmp.ne.s32.totalorder %v279, 4294967295
  %vm297 = vcmp.ne.s32.totalorder %v280, 4294967295
  %s298 = smul.u32 0, 128
  %v299 = vlaneseq
  %v300 = vshrl.u32 %v299, 7
  %v301 = vadd.s32 %v300, 8
  %v302 = vadd.s32 %v300, 16
  %v303 = vadd.s32 %v300, 24
  %v304 = vadd.s32 %v300, 32
  %v305 = vadd.s32 %v300, 40
  %v306 = vadd.s32 %v300, 48
  %v307 = vadd.s32 %v300, 56
  %v308 = vadd.s32 %v300, 64
  %v309 = vadd.s32 %v300, 72
  %v310 = vadd.s32 %v300, 80
  %v311 = vadd.s32 %v300, 88
  %v312 = vadd.s32 %v300, 96
  %v313 = vadd.s32 %v300, 104
  %v314 = vadd.s32 %v300, 112
  %v315 = vadd.s32 %v300, 120
  %v316 = vstv %s298
  %v317 = vadd.s32 %v316, %v300
  %v318 = vadd.s32 %v316, %v301
  %v319 = vadd.s32 %v316, %v302
  %v320 = vadd.s32 %v316, %v303
  %v321 = vadd.s32 %v316, %v304
  %v322 = vadd.s32 %v316, %v305
  %v323 = vadd.s32 %v316, %v306
  %v324 = vadd.s32 %v316, %v307
  %v325 = vadd.s32 %v316, %v308
  %v326 = vadd.s32 %v316, %v309
  %v327 = vadd.s32 %v316, %v310
  %v328 = vadd.s32 %v316, %v311
  %v329 = vadd.s32 %v316, %v312
  %v330 = vadd.s32 %v316, %v313
  %v331 = vadd.s32 %v316, %v314
  %v332 = vadd.s32 %v316, %v315
  %s333 = smul.u32 0, 128
  %v334 = vlaneseq
  %v335 = vand.u32 %v334, 127
  %v336 = vstv %s333
  %v337 = vadd.s32 %v336, %v335
  %vm338 = vcmp.ne.s32.totalorder %v317, %v337
  %vm339 = vcmp.ne.s32.totalorder %v318, %v337
  %vm340 = vcmp.ne.s32.totalorder %v319, %v337
  %vm341 = vcmp.ne.s32.totalorder %v320, %v337
  %vm342 = vcmp.ne.s32.totalorder %v321, %v337
  %vm343 = vcmp.ne.s32.totalorder %v322, %v337
  %vm344 = vcmp.ne.s32.totalorder %v323, %v337
  %vm345 = vcmp.ne.s32.totalorder %v324, %v337
  %vm346 = vcmp.ne.s32.totalorder %v325, %v337
  %vm347 = vcmp.ne.s32.totalorder %v326, %v337
  %vm348 = vcmp.ne.s32.totalorder %v327, %v337
  %vm349 = vcmp.ne.s32.totalorder %v328, %v337
  %vm350 = vcmp.ne.s32.totalorder %v329, %v337
  %vm351 = vcmp.ne.s32.totalorder %v330, %v337
  %vm352 = vcmp.ne.s32.totalorder %v331, %v337
  %vm353 = vcmp.ne.s32.totalorder %v332, %v337
  %vm354 = vcmp.lt.s32.totalorder %v337, 8
  %vm355 = vmxor %vm281, 1
  %vm356 = vmxor %vm282, 1
  %vm357 = vmxor %vm283, 1
  %vm358 = vmxor %vm284, 1
  %vm359 = vmxor %vm285, 1
  %vm360 = vmxor %vm286, 1
  %vm361 = vmxor %vm287, 1
  %vm362 = vmxor %vm288, 1
  %vm363 = vmxor %vm289, 1
  %vm364 = vmxor %vm290, 1
  %vm365 = vmxor %vm291, 1
  %vm366 = vmxor %vm292, 1
  %vm367 = vmxor %vm293, 1
  %vm368 = vmxor %vm294, 1
  %vm369 = vmxor %vm295, 1
  %vm370 = vmxor %vm296, 1
  %vm371 = vmxor %vm297, 1
  %v372 = vsel %vm355, 1, 0
  %v373 = vsel %vm356, 1, 0
  %v374 = vsel %vm357, 1, 0
  %v375 = vsel %vm358, 1, 0
  %v376 = vsel %vm359, 1, 0
  %v377 = vsel %vm360, 1, 0
  %v378 = vsel %vm361, 1, 0
  %v379 = vsel %vm362, 1, 0
  %v380 = vsel %vm363, 1, 0
  %v381 = vsel %vm364, 1, 0
  %v382 = vsel %vm365, 1, 0
  %v383 = vsel %vm366, 1, 0
  %v384 = vsel %vm367, 1, 0
  %v385 = vsel %vm368, 1, 0
  %v386 = vsel %vm369, 1, 0
  %v387 = vsel %vm370, 1, 0
  %388 = vset.pattern.permute.xlu0 0
  %389 = vperm.xlu0 %388, %v372
  %v390 = vpop.permute.xlu0 %389
  %391 = vset.pattern.permute.xlu0 0
  %392 = vperm.xlu0 %391, %v373
  %v393 = vpop.permute.xlu0 %392
  %394 = vset.pattern.permute.xlu0 0
  %395 = vperm.xlu0 %394, %v374
  %v396 = vpop.permute.xlu0 %395
  %397 = vset.pattern.permute.xlu0 0
  %398 = vperm.xlu0 %397, %v375
  %v399 = vpop.permute.xlu0 %398
  %400 = vset.pattern.permute.xlu0 0
  %401 = vperm.xlu0 %400, %v376
  %v402 = vpop.permute.xlu0 %401
  %403 = vset.pattern.permute.xlu0 0
  %404 = vperm.xlu0 %403, %v377
  %v405 = vpop.permute.xlu0 %404
  %406 = vset.pattern.permute.xlu0 0
  %407 = vperm.xlu0 %406, %v378
  %v408 = vpop.permute.xlu0 %407
  %409 = vset.pattern.permute.xlu0 0
  %410 = vperm.xlu0 %409, %v379
  %v411 = vpop.permute.xlu0 %410
  %412 = vset.pattern.permute.xlu0 0
  %413 = vperm.xlu0 %412, %v380
  %v414 = vpop.permute.xlu0 %413
  %415 = vset.pattern.permute.xlu0 0
  %416 = vperm.xlu0 %415, %v381
  %v417 = vpop.permute.xlu0 %416
  %418 = vset.pattern.permute.xlu0 0
  %419 = vperm.xlu0 %418, %v382
  %v420 = vpop.permute.xlu0 %419
  %421 = vset.pattern.permute.xlu0 0
  %422 = vperm.xlu0 %421, %v383
  %v423 = vpop.permute.xlu0 %422
  %424 = vset.pattern.permute.xlu0 0
  %425 = vperm.xlu0 %424, %v384
  %v426 = vpop.permute.xlu0 %425
  %427 = vset.pattern.permute.xlu0 0
  %428 = vperm.xlu0 %427, %v385
  %v429 = vpop.permute.xlu0 %428
  %430 = vset.pattern.permute.xlu0 0
  %431 = vperm.xlu0 %430, %v386
  %v432 = vpop.permute.xlu0 %431
  %433 = vset.pattern.permute.xlu0 0
  %434 = vperm.xlu0 %433, %v387
  %v435 = vpop.permute.xlu0 %434
  %vm436 = vcmp.eq.s32.totalorder %v390, 1
  %vm437 = vcmp.eq.s32.totalorder %v393, 1
  %vm438 = vcmp.eq.s32.totalorder %v396, 1
  %vm439 = vcmp.eq.s32.totalorder %v399, 1
  %vm440 = vcmp.eq.s32.totalorder %v402, 1
  %vm441 = vcmp.eq.s32.totalorder %v405, 1
  %vm442 = vcmp.eq.s32.totalorder %v408, 1
  %vm443 = vcmp.eq.s32.totalorder %v411, 1
  %vm444 = vcmp.eq.s32.totalorder %v414, 1
  %vm445 = vcmp.eq.s32.totalorder %v417, 1
  %vm446 = vcmp.eq.s32.totalorder %v420, 1
  %vm447 = vcmp.eq.s32.totalorder %v423, 1
  %vm448 = vcmp.eq.s32.totalorder %v426, 1
  %vm449 = vcmp.eq.s32.totalorder %v429, 1
  %vm450 = vcmp.eq.s32.totalorder %v432, 1
  %vm451 = vcmp.eq.s32.totalorder %v435, 1
  %v452 = vsel %vm371, 1, 0
  %v453 = vlaneseq
  %v454 = vshrl.u32 %v453, 7
  %v455 = vsub.s32 0, %v454
  %v456 = vrot.slane %v452, %v455
  %vm457 = vcmp.eq.s32.totalorder %v456, 1
  %vm458 = vmor %vm436, %vm457
  %vm459 = vmor %vm437, %vm457
  %vm460 = vmor %vm438, %vm457
  %vm461 = vmor %vm439, %vm457
  %vm462 = vmor %vm440, %vm457
  %vm463 = vmor %vm441, %vm457
  %vm464 = vmor %vm442, %vm457
  %vm465 = vmor %vm443, %vm457
  %vm466 = vmor %vm444, %vm457
  %vm467 = vmor %vm445, %vm457
  %vm468 = vmor %vm446, %vm457
  %vm469 = vmor %vm447, %vm457
  %vm470 = vmor %vm448, %vm457
  %vm471 = vmor %vm449, %vm457
  %vm472 = vmor %vm450, %vm457
  %vm473 = vmor %vm451, %vm457
  %vm474 = vmand %vm458, %vm338
  %vm475 = vmand %vm459, %vm339
  %vm476 = vmand %vm460, %vm340
  %vm477 = vmand %vm461, %vm341
  %vm478 = vmand %vm462, %vm342
  %vm479 = vmand %vm463, %vm343
  %vm480 = vmand %vm464, %vm344
  %vm481 = vmand %vm465, %vm345
  %vm482 = vmand %vm466, %vm346
  %vm483 = vmand %vm467, %vm347
  %vm484 = vmand %vm468, %vm348
  %vm485 = vmand %vm469, %vm349
  %vm486 = vmand %vm470, %vm350
  %vm487 = vmand %vm471, %vm351
  %vm488 = vmand %vm472, %vm352
  %vm489 = vmand %vm473, %vm353
  %v490 = vmul.f32 %v202, 1.6
  %v491 = vmul.f32 %v205, 1.6
  %v492 = vmul.f32 %v210, 1.6
  %v493 = vmul.f32 %v213, 1.6
  %v494 = vmul.f32 %v218, 1.6
  %v495 = vmul.f32 %v221, 1.6
  %v496 = vmul.f32 %v226, 1.6
  %v497 = vmul.f32 %v229, 1.6
  %v498 = vmul.f32 %v234, 1.6
  %v499 = vmul.f32 %v237, 1.6
  %v500 = vmul.f32 %v242, 1.6
  %v501 = vmul.f32 %v245, 1.6
  %v502 = vmul.f32 %v250, 1.6
  %v503 = vmul.f32 %v253, 1.6
  %v504 = vmul.f32 %v258, 1.6
  %v505 = vmul.f32 %v261, 1.6
  %v506 = vsub.f32 %v490, 0.6
  %v507 = vsub.f32 %v491, 0.6
  %v508 = vsub.f32 %v492, 0.6
  %v509 = vsub.f32 %v493, 0.6
  %v510 = vsub.f32 %v494, 0.6
  %v511 = vsub.f32 %v495, 0.6
  %v512 = vsub.f32 %v496, 0.6
  %v513 = vsub.f32 %v497, 0.6
  %v514 = vsub.f32 %v498, 0.6
  %v515 = vsub.f32 %v499, 0.6
  %v516 = vsub.f32 %v500, 0.6
  %v517 = vsub.f32 %v501, 0.6
  %v518 = vsub.f32 %v502, 0.6
  %v519 = vsub.f32 %v503, 0.6
  %v520 = vsub.f32 %v504, 0.6
  %v521 = vsub.f32 %v505, 0.6
  %v522 = vsel %vm474, %v506, %v202
  %v523 = vsel %vm475, %v507, %v205
  %v524 = vsel %vm476, %v508, %v210
  %v525 = vsel %vm477, %v509, %v213
  %v526 = vsel %vm478, %v510, %v218
  %v527 = vsel %vm479, %v511, %v221
  %v528 = vsel %vm480, %v512, %v226
  %v529 = vsel %vm481, %v513, %v229
  %v530 = vsel %vm482, %v514, %v234
  %v531 = vsel %vm483, %v515, %v237
  %v532 = vsel %vm484, %v516, %v242
  %v533 = vsel %vm485, %v517, %v245
  %v534 = vsel %vm486, %v518, %v250
  %v535 = vsel %vm487, %v519, %v253
  %v536 = vsel %vm488, %v520, %v258
  %v537 = vsel %vm489, %v521, %v261
  %538 = vset.pattern.permute.xlu0 0
  %539 = vperm.xlu0 %538, %v264
  %v540 = vpop.permute.xlu0 %539
  %541 = vset.pattern.permute.xlu0 0
  %542 = vperm.xlu0 %541, %v265
  %v543 = vpop.permute.xlu0 %542
  %544 = vset.pattern.permute.xlu0 0
  %545 = vperm.xlu0 %544, %v266
  %v546 = vpop.permute.xlu0 %545
  %547 = vset.pattern.permute.xlu0 0
  %548 = vperm.xlu0 %547, %v267
  %v549 = vpop.permute.xlu0 %548
  %550 = vset.pattern.permute.xlu0 0
  %551 = vperm.xlu0 %550, %v268
  %v552 = vpop.permute.xlu0 %551
  %553 = vset.pattern.permute.xlu0 0
  %554 = vperm.xlu0 %553, %v269
  %v555 = vpop.permute.xlu0 %554
  %556 = vset.pattern.permute.xlu0 0
  %557 = vperm.xlu0 %556, %v270
  %v558 = vpop.permute.xlu0 %557
  %559 = vset.pattern.permute.xlu0 0
  %560 = vperm.xlu0 %559, %v271
  %v561 = vpop.permute.xlu0 %560
  %562 = vset.pattern.permute.xlu0 0
  %563 = vperm.xlu0 %562, %v272
  %v564 = vpop.permute.xlu0 %563
  %565 = vset.pattern.permute.xlu0 0
  %566 = vperm.xlu0 %565, %v273
  %v567 = vpop.permute.xlu0 %566
  %568 = vset.pattern.permute.xlu0 0
  %569 = vperm.xlu0 %568, %v274
  %v570 = vpop.permute.xlu0 %569
  %571 = vset.pattern.permute.xlu0 0
  %572 = vperm.xlu0 %571, %v275
  %v573 = vpop.permute.xlu0 %572
  %574 = vset.pattern.permute.xlu0 0
  %575 = vperm.xlu0 %574, %v276
  %v576 = vpop.permute.xlu0 %575
  %577 = vset.pattern.permute.xlu0 0
  %578 = vperm.xlu0 %577, %v277
  %v579 = vpop.permute.xlu0 %578
  %580 = vset.pattern.permute.xlu0 0
  %581 = vperm.xlu0 %580, %v278
  %v582 = vpop.permute.xlu0 %581
  %583 = vset.pattern.permute.xlu0 0
  %584 = vperm.xlu0 %583, %v279
  %v585 = vpop.permute.xlu0 %584
  %v586 = vlaneseq
  %v587 = vshrl.u32 %v586, 7
  %v588 = vsub.s32 0, %v587
  %v589 = vrot.slane %v280, %v588
  %vm590 = vcmp.eq.s32.totalorder %v540, %v589
  %vm591 = vcmp.eq.s32.totalorder %v543, %v589
  %vm592 = vcmp.eq.s32.totalorder %v546, %v589
  %vm593 = vcmp.eq.s32.totalorder %v549, %v589
  %vm594 = vcmp.eq.s32.totalorder %v552, %v589
  %vm595 = vcmp.eq.s32.totalorder %v555, %v589
  %vm596 = vcmp.eq.s32.totalorder %v558, %v589
  %vm597 = vcmp.eq.s32.totalorder %v561, %v589
  %vm598 = vcmp.eq.s32.totalorder %v564, %v589
  %vm599 = vcmp.eq.s32.totalorder %v567, %v589
  %vm600 = vcmp.eq.s32.totalorder %v570, %v589
  %vm601 = vcmp.eq.s32.totalorder %v573, %v589
  %vm602 = vcmp.eq.s32.totalorder %v576, %v589
  %vm603 = vcmp.eq.s32.totalorder %v579, %v589
  %vm604 = vcmp.eq.s32.totalorder %v582, %v589
  %vm605 = vcmp.eq.s32.totalorder %v585, %v589
  %v606 = vsel %vm281, 1, 0
  %v607 = vsel %vm282, 1, 0
  %v608 = vsel %vm283, 1, 0
  %v609 = vsel %vm284, 1, 0
  %v610 = vsel %vm285, 1, 0
  %v611 = vsel %vm286, 1, 0
  %v612 = vsel %vm287, 1, 0
  %v613 = vsel %vm288, 1, 0
  %v614 = vsel %vm289, 1, 0
  %v615 = vsel %vm290, 1, 0
  %v616 = vsel %vm291, 1, 0
  %v617 = vsel %vm292, 1, 0
  %v618 = vsel %vm293, 1, 0
  %v619 = vsel %vm294, 1, 0
  %v620 = vsel %vm295, 1, 0
  %v621 = vsel %vm296, 1, 0
  %622 = vset.pattern.permute.xlu0 0
  %623 = vperm.xlu0 %622, %v606
  %v624 = vpop.permute.xlu0 %623
  %625 = vset.pattern.permute.xlu0 0
  %626 = vperm.xlu0 %625, %v607
  %v627 = vpop.permute.xlu0 %626
  %628 = vset.pattern.permute.xlu0 0
  %629 = vperm.xlu0 %628, %v608
  %v630 = vpop.permute.xlu0 %629
  %631 = vset.pattern.permute.xlu0 0
  %632 = vperm.xlu0 %631, %v609
  %v633 = vpop.permute.xlu0 %632
  %634 = vset.pattern.permute.xlu0 0
  %635 = vperm.xlu0 %634, %v610
  %v636 = vpop.permute.xlu0 %635
  %637 = vset.pattern.permute.xlu0 0
  %638 = vperm.xlu0 %637, %v611
  %v639 = vpop.permute.xlu0 %638
  %640 = vset.pattern.permute.xlu0 0
  %641 = vperm.xlu0 %640, %v612
  %v642 = vpop.permute.xlu0 %641
  %643 = vset.pattern.permute.xlu0 0
  %644 = vperm.xlu0 %643, %v613
  %v645 = vpop.permute.xlu0 %644
  %646 = vset.pattern.permute.xlu0 0
  %647 = vperm.xlu0 %646, %v614
  %v648 = vpop.permute.xlu0 %647
  %649 = vset.pattern.permute.xlu0 0
  %650 = vperm.xlu0 %649, %v615
  %v651 = vpop.permute.xlu0 %650
  %652 = vset.pattern.permute.xlu0 0
  %653 = vperm.xlu0 %652, %v616
  %v654 = vpop.permute.xlu0 %653
  %655 = vset.pattern.permute.xlu0 0
  %656 = vperm.xlu0 %655, %v617
  %v657 = vpop.permute.xlu0 %656
  %658 = vset.pattern.permute.xlu0 0
  %659 = vperm.xlu0 %658, %v618
  %v660 = vpop.permute.xlu0 %659
  %661 = vset.pattern.permute.xlu0 0
  %662 = vperm.xlu0 %661, %v619
  %v663 = vpop.permute.xlu0 %662
  %664 = vset.pattern.permute.xlu0 0
  %665 = vperm.xlu0 %664, %v620
  %v666 = vpop.permute.xlu0 %665
  %667 = vset.pattern.permute.xlu0 0
  %668 = vperm.xlu0 %667, %v621
  %v669 = vpop.permute.xlu0 %668
  %vm670 = vcmp.eq.s32.totalorder %v624, 1
  %vm671 = vcmp.eq.s32.totalorder %v627, 1
  %vm672 = vcmp.eq.s32.totalorder %v630, 1
  %vm673 = vcmp.eq.s32.totalorder %v633, 1
  %vm674 = vcmp.eq.s32.totalorder %v636, 1
  %vm675 = vcmp.eq.s32.totalorder %v639, 1
  %vm676 = vcmp.eq.s32.totalorder %v642, 1
  %vm677 = vcmp.eq.s32.totalorder %v645, 1
  %vm678 = vcmp.eq.s32.totalorder %v648, 1
  %vm679 = vcmp.eq.s32.totalorder %v651, 1
  %vm680 = vcmp.eq.s32.totalorder %v654, 1
  %vm681 = vcmp.eq.s32.totalorder %v657, 1
  %vm682 = vcmp.eq.s32.totalorder %v660, 1
  %vm683 = vcmp.eq.s32.totalorder %v663, 1
  %vm684 = vcmp.eq.s32.totalorder %v666, 1
  %vm685 = vcmp.eq.s32.totalorder %v669, 1
  %vm686 = vmand %vm590, %vm670
  %vm687 = vmand %vm591, %vm671
  %vm688 = vmand %vm592, %vm672
  %vm689 = vmand %vm593, %vm673
  %vm690 = vmand %vm594, %vm674
  %vm691 = vmand %vm595, %vm675
  %vm692 = vmand %vm596, %vm676
  %vm693 = vmand %vm597, %vm677
  %vm694 = vmand %vm598, %vm678
  %vm695 = vmand %vm599, %vm679
  %vm696 = vmand %vm600, %vm680
  %vm697 = vmand %vm601, %vm681
  %vm698 = vmand %vm602, %vm682
  %vm699 = vmand %vm603, %vm683
  %vm700 = vmand %vm604, %vm684
  %vm701 = vmand %vm605, %vm685
  %v702 = vsel %vm297, 1, 0
  %v703 = vlaneseq
  %v704 = vshrl.u32 %v703, 7
  %v705 = vsub.s32 0, %v704
  %v706 = vrot.slane %v702, %v705
  %vm707 = vcmp.eq.s32.totalorder %v706, 1
  %vm708 = vmand %vm686, %vm707
  %vm709 = vmand %vm687, %vm707
  %vm710 = vmand %vm688, %vm707
  %vm711 = vmand %vm689, %vm707
  %vm712 = vmand %vm690, %vm707
  %vm713 = vmand %vm691, %vm707
  %vm714 = vmand %vm692, %vm707
  %vm715 = vmand %vm693, %vm707
  %vm716 = vmand %vm694, %vm707
  %vm717 = vmand %vm695, %vm707
  %vm718 = vmand %vm696, %vm707
  %vm719 = vmand %vm697, %vm707
  %vm720 = vmand %vm698, %vm707
  %vm721 = vmand %vm699, %vm707
  %vm722 = vmand %vm700, %vm707
  %vm723 = vmand %vm701, %vm707
  %v724 = vsel %vm354, 1, 0
  %vm725 = vcmp.eq.s32.totalorder %v724, 1
  %vm726 = vmand %vm708, %vm725
  %vm727 = vmand %vm709, %vm725
  %vm728 = vmand %vm710, %vm725
  %vm729 = vmand %vm711, %vm725
  %vm730 = vmand %vm712, %vm725
  %vm731 = vmand %vm713, %vm725
  %vm732 = vmand %vm714, %vm725
  %vm733 = vmand %vm715, %vm725
  %vm734 = vmand %vm716, %vm725
  %vm735 = vmand %vm717, %vm725
  %vm736 = vmand %vm718, %vm725
  %vm737 = vmand %vm719, %vm725
  %vm738 = vmand %vm720, %vm725
  %vm739 = vmand %vm721, %vm725
  %vm740 = vmand %vm722, %vm725
  %vm741 = vmand %vm723, %vm725
  %v742 = vsel %vm726, %v522, 0.0
  %v743 = vsel %vm727, %v523, 0.0
  %v744 = vsel %vm728, %v524, 0.0
  %v745 = vsel %vm729, %v525, 0.0
  %v746 = vsel %vm730, %v526, 0.0
  %v747 = vsel %vm731, %v527, 0.0
  %v748 = vsel %vm732, %v528, 0.0
  %v749 = vsel %vm733, %v529, 0.0
  %v750 = vsel %vm734, %v530, 0.0
  %v751 = vsel %vm735, %v531, 0.0
  %v752 = vsel %vm736, %v532, 0.0
  %v753 = vsel %vm737, %v533, 0.0
  %v754 = vsel %vm738, %v534, 0.0
  %v755 = vsel %vm739, %v535, 0.0
  %v756 = vsel %vm740, %v536, 0.0
  %v757 = vsel %vm741, %v537, 0.0
  %v758 = vsel %vm726, 1.0, 0.0
  %v759 = vsel %vm727, 1.0, 0.0
  %v760 = vsel %vm728, 1.0, 0.0
  %v761 = vsel %vm729, 1.0, 0.0
  %v762 = vsel %vm730, 1.0, 0.0
  %v763 = vsel %vm731, 1.0, 0.0
  %v764 = vsel %vm732, 1.0, 0.0
  %v765 = vsel %vm733, 1.0, 0.0
  %v766 = vsel %vm734, 1.0, 0.0
  %v767 = vsel %vm735, 1.0, 0.0
  %v768 = vsel %vm736, 1.0, 0.0
  %v769 = vsel %vm737, 1.0, 0.0
  %v770 = vsel %vm738, 1.0, 0.0
  %v771 = vsel %vm739, 1.0, 0.0
  %v772 = vsel %vm740, 1.0, 0.0
  %v773 = vsel %vm741, 1.0, 0.0
  %vm774 = vmand %vm338, %vm725
  %vm775 = vmand %vm339, %vm725
  %vm776 = vmand %vm340, %vm725
  %vm777 = vmand %vm341, %vm725
  %vm778 = vmand %vm342, %vm725
  %vm779 = vmand %vm343, %vm725
  %vm780 = vmand %vm344, %vm725
  %vm781 = vmand %vm345, %vm725
  %vm782 = vmand %vm346, %vm725
  %vm783 = vmand %vm347, %vm725
  %vm784 = vmand %vm348, %vm725
  %vm785 = vmand %vm349, %vm725
  %vm786 = vmand %vm350, %vm725
  %vm787 = vmand %vm351, %vm725
  %vm788 = vmand %vm352, %vm725
  %vm789 = vmand %vm353, %vm725
  %v790 = vmul.f32 %v522, 1.442695
  %v791 = vpow.pop %v790
  %v792 = vmul.f32 %v523, 1.442695
  %v793 = vpow.pop %v792
  %v794 = vmul.f32 %v524, 1.442695
  %v795 = vpow.pop %v794
  %v796 = vmul.f32 %v525, 1.442695
  %v797 = vpow.pop %v796
  %v798 = vmul.f32 %v526, 1.442695
  %v799 = vpow.pop %v798
  %v800 = vmul.f32 %v527, 1.442695
  %v801 = vpow.pop %v800
  %v802 = vmul.f32 %v528, 1.442695
  %v803 = vpow.pop %v802
  %v804 = vmul.f32 %v529, 1.442695
  %v805 = vpow.pop %v804
  %v806 = vmul.f32 %v530, 1.442695
  %v807 = vpow.pop %v806
  %v808 = vmul.f32 %v531, 1.442695
  %v809 = vpow.pop %v808
  %v810 = vmul.f32 %v532, 1.442695
  %v811 = vpow.pop %v810
  %v812 = vmul.f32 %v533, 1.442695
  %v813 = vpow.pop %v812
  %v814 = vmul.f32 %v534, 1.442695
  %v815 = vpow.pop %v814
  %v816 = vmul.f32 %v535, 1.442695
  %v817 = vpow.pop %v816
  %v818 = vmul.f32 %v536, 1.442695
  %v819 = vpow.pop %v818
  %v820 = vmul.f32 %v537, 1.442695
  %v821 = vpow.pop %v820
  %v822 = vsel %vm774, %v791, 0.0
  %v823 = vsel %vm775, %v793, 0.0
  %v824 = vsel %vm776, %v795, 0.0
  %v825 = vsel %vm777, %v797, 0.0
  %v826 = vsel %vm778, %v799, 0.0
  %v827 = vsel %vm779, %v801, 0.0
  %v828 = vsel %vm780, %v803, 0.0
  %v829 = vsel %vm781, %v805, 0.0
  %v830 = vsel %vm782, %v807, 0.0
  %v831 = vsel %vm783, %v809, 0.0
  %v832 = vsel %vm784, %v811, 0.0
  %v833 = vsel %vm785, %v813, 0.0
  %v834 = vsel %vm786, %v815, 0.0
  %v835 = vsel %vm787, %v817, 0.0
  %v836 = vsel %vm788, %v819, 0.0
  %v837 = vsel %vm789, %v821, 0.0
  %v838 = vld [vmem:[#allocation2] sm:$0xff]
  %v839 = vld [vmem:[#allocation2 + $0x8] sm:$0xff]
  %v840 = vld [vmem:[#allocation2 + $0x10] sm:$0xff]
  %v841 = vld [vmem:[#allocation2 + $0x18] sm:$0xff]
  %v842 = vld [vmem:[#allocation2 + $0x20] sm:$0xff]
  %v843 = vld [vmem:[#allocation2 + $0x28] sm:$0xff]
  %v844 = vld [vmem:[#allocation2 + $0x30] sm:$0xff]
  %v845 = vld [vmem:[#allocation2 + $0x38] sm:$0xff]
  %v846 = vld [vmem:[#allocation2 + $0x40] sm:$0xff]
  %v847 = vld [vmem:[#allocation2 + $0x48] sm:$0xff]
  %v848 = vld [vmem:[#allocation2 + $0x50] sm:$0xff]
  %v849 = vld [vmem:[#allocation2 + $0x58] sm:$0xff]
  %v850 = vld [vmem:[#allocation2 + $0x60] sm:$0xff]
  %v851 = vld [vmem:[#allocation2 + $0x68] sm:$0xff]
  %v852 = vld [vmem:[#allocation2 + $0x70] sm:$0xff]
  %v853 = vld [vmem:[#allocation2 + $0x78] sm:$0xff]
  %v854 = vadd.f32 %v838, %v742
  %v855 = vadd.f32 %v839, %v743
  %v856 = vadd.f32 %v840, %v744
  %v857 = vadd.f32 %v841, %v745
  %v858 = vadd.f32 %v842, %v746
  %v859 = vadd.f32 %v843, %v747
  %v860 = vadd.f32 %v844, %v748
  %v861 = vadd.f32 %v845, %v749
  %v862 = vadd.f32 %v846, %v750
  %v863 = vadd.f32 %v847, %v751
  %v864 = vadd.f32 %v848, %v752
  %v865 = vadd.f32 %v849, %v753
  %v866 = vadd.f32 %v850, %v754
  %v867 = vadd.f32 %v851, %v755
  %v868 = vadd.f32 %v852, %v756
  %v869 = vadd.f32 %v853, %v757
  %870 = vst [vmem:[#allocation2] sm:$0xff] %v854
  %871 = vst [vmem:[#allocation2 + $0x8] sm:$0xff] %v855
  %872 = vst [vmem:[#allocation2 + $0x10] sm:$0xff] %v856
  %873 = vst [vmem:[#allocation2 + $0x18] sm:$0xff] %v857
  %874 = vst [vmem:[#allocation2 + $0x20] sm:$0xff] %v858
  %875 = vst [vmem:[#allocation2 + $0x28] sm:$0xff] %v859
  %876 = vst [vmem:[#allocation2 + $0x30] sm:$0xff] %v860
  %877 = vst [vmem:[#allocation2 + $0x38] sm:$0xff] %v861
  %878 = vst [vmem:[#allocation2 + $0x40] sm:$0xff] %v862
  %879 = vst [vmem:[#allocation2 + $0x48] sm:$0xff] %v863
  %880 = vst [vmem:[#allocation2 + $0x50] sm:$0xff] %v864
  %881 = vst [vmem:[#allocation2 + $0x58] sm:$0xff] %v865
  %882 = vst [vmem:[#allocation2 + $0x60] sm:$0xff] %v866
  %883 = vst [vmem:[#allocation2 + $0x68] sm:$0xff] %v867
  %884 = vst [vmem:[#allocation2 + $0x70] sm:$0xff] %v868
  %885 = vst [vmem:[#allocation2 + $0x78] sm:$0xff] %v869
  %v886 = vld [vmem:[#allocation3] sm:$0xff]
  %v887 = vld [vmem:[#allocation3 + $0x8] sm:$0xff]
  %v888 = vld [vmem:[#allocation3 + $0x10] sm:$0xff]
  %v889 = vld [vmem:[#allocation3 + $0x18] sm:$0xff]
  %v890 = vld [vmem:[#allocation3 + $0x20] sm:$0xff]
  %v891 = vld [vmem:[#allocation3 + $0x28] sm:$0xff]
  %v892 = vld [vmem:[#allocation3 + $0x30] sm:$0xff]
  %v893 = vld [vmem:[#allocation3 + $0x38] sm:$0xff]
  %v894 = vld [vmem:[#allocation3 + $0x40] sm:$0xff]
  %v895 = vld [vmem:[#allocation3 + $0x48] sm:$0xff]
  %v896 = vld [vmem:[#allocation3 + $0x50] sm:$0xff]
  %v897 = vld [vmem:[#allocation3 + $0x58] sm:$0xff]
  %v898 = vld [vmem:[#allocation3 + $0x60] sm:$0xff]
  %v899 = vld [vmem:[#allocation3 + $0x68] sm:$0xff]
  %v900 = vld [vmem:[#allocation3 + $0x70] sm:$0xff]
  %v901 = vld [vmem:[#allocation3 + $0x78] sm:$0xff]
  %v902 = vadd.f32 %v886, %v758
  %v903 = vadd.f32 %v887, %v759
  %v904 = vadd.f32 %v888, %v760
  %v905 = vadd.f32 %v889, %v761
  %v906 = vadd.f32 %v890, %v762
  %v907 = vadd.f32 %v891, %v763
  %v908 = vadd.f32 %v892, %v764
  %v909 = vadd.f32 %v893, %v765
  %v910 = vadd.f32 %v894, %v766
  %v911 = vadd.f32 %v895, %v767
  %v912 = vadd.f32 %v896, %v768
  %v913 = vadd.f32 %v897, %v769
  %v914 = vadd.f32 %v898, %v770
  %v915 = vadd.f32 %v899, %v771
  %v916 = vadd.f32 %v900, %v772
  %v917 = vadd.f32 %v901, %v773
  %918 = vst [vmem:[#allocation3] sm:$0xff] %v902
  %919 = vst [vmem:[#allocation3 + $0x8] sm:$0xff] %v903
  %920 = vst [vmem:[#allocation3 + $0x10] sm:$0xff] %v904
  %921 = vst [vmem:[#allocation3 + $0x18] sm:$0xff] %v905
  %922 = vst [vmem:[#allocation3 + $0x20] sm:$0xff] %v906
  %923 = vst [vmem:[#allocation3 + $0x28] sm:$0xff] %v907
  %924 = vst [vmem:[#allocation3 + $0x30] sm:$0xff] %v908
  %925 = vst [vmem:[#allocation3 + $0x38] sm:$0xff] %v909
  %926 = vst [vmem:[#allocation3 + $0x40] sm:$0xff] %v910
  %927 = vst [vmem:[#allocation3 + $0x48] sm:$0xff] %v911
  %928 = vst [vmem:[#allocation3 + $0x50] sm:$0xff] %v912
  %929 = vst [vmem:[#allocation3 + $0x58] sm:$0xff] %v913
  %930 = vst [vmem:[#allocation3 + $0x60] sm:$0xff] %v914
  %931 = vst [vmem:[#allocation3 + $0x68] sm:$0xff] %v915
  %932 = vst [vmem:[#allocation3 + $0x70] sm:$0xff] %v916
  %933 = vst [vmem:[#allocation3 + $0x78] sm:$0xff] %v917
  %v934 = vld [vmem:[#allocation4] sm:$0xff]
  %v935 = vld [vmem:[#allocation4 + $0x8] sm:$0xff]
  %v936 = vld [vmem:[#allocation4 + $0x10] sm:$0xff]
  %v937 = vld [vmem:[#allocation4 + $0x18] sm:$0xff]
  %v938 = vld [vmem:[#allocation4 + $0x20] sm:$0xff]
  %v939 = vld [vmem:[#allocation4 + $0x28] sm:$0xff]
  %v940 = vld [vmem:[#allocation4 + $0x30] sm:$0xff]
  %v941 = vld [vmem:[#allocation4 + $0x38] sm:$0xff]
  %v942 = vld [vmem:[#allocation4 + $0x40] sm:$0xff]
  %v943 = vld [vmem:[#allocation4 + $0x48] sm:$0xff]
  %v944 = vld [vmem:[#allocation4 + $0x50] sm:$0xff]
  %v945 = vld [vmem:[#allocation4 + $0x58] sm:$0xff]
  %v946 = vld [vmem:[#allocation4 + $0x60] sm:$0xff]
  %v947 = vld [vmem:[#allocation4 + $0x68] sm:$0xff]
  %v948 = vld [vmem:[#allocation4 + $0x70] sm:$0xff]
  %v949 = vld [vmem:[#allocation4 + $0x78] sm:$0xff]
  %v950 = vadd.f32 %v934, %v822
  %v951 = vadd.f32 %v935, %v823
  %v952 = vadd.f32 %v936, %v824
  %v953 = vadd.f32 %v937, %v825
  %v954 = vadd.f32 %v938, %v826
  %v955 = vadd.f32 %v939, %v827
  %v956 = vadd.f32 %v940, %v828
  %v957 = vadd.f32 %v941, %v829
  %v958 = vadd.f32 %v942, %v830
  %v959 = vadd.f32 %v943, %v831
  %v960 = vadd.f32 %v944, %v832
  %v961 = vadd.f32 %v945, %v833
  %v962 = vadd.f32 %v946, %v834
  %v963 = vadd.f32 %v947, %v835
  %v964 = vadd.f32 %v948, %v836
  %v965 = vadd.f32 %v949, %v837
  %966 = vst [vmem:[#allocation4] sm:$0xff] %v950
  %967 = vst [vmem:[#allocation4 + $0x8] sm:$0xff] %v951
  %968 = vst [vmem:[#allocation4 + $0x10] sm:$0xff] %v952
  %969 = vst [vmem:[#allocation4 + $0x18] sm:$0xff] %v953
  %970 = vst [vmem:[#allocation4 + $0x20] sm:$0xff] %v954
  %971 = vst [vmem:[#allocation4 + $0x28] sm:$0xff] %v955
  %972 = vst [vmem:[#allocation4 + $0x30] sm:$0xff] %v956
  %973 = vst [vmem:[#allocation4 + $0x38] sm:$0xff] %v957
  %974 = vst [vmem:[#allocation4 + $0x40] sm:$0xff] %v958
  %975 = vst [vmem:[#allocation4 + $0x48] sm:$0xff] %v959
  %976 = vst [vmem:[#allocation4 + $0x50] sm:$0xff] %v960
  %977 = vst [vmem:[#allocation4 + $0x58] sm:$0xff] %v961
  %978 = vst [vmem:[#allocation4 + $0x60] sm:$0xff] %v962
  %979 = vst [vmem:[#allocation4 + $0x68] sm:$0xff] %v963
  %980 = vst [vmem:[#allocation4 + $0x70] sm:$0xff] %v964
  %981 = vst [vmem:[#allocation4 + $0x78] sm:$0xff] %v965
  // Predicated region
  $region22: #{tpu_custom_call.1} parent=0 // pred_check
    %p982 = pneg %p18
  $region23: #{tpu_custom_call.1} parent=0 // pred_check_branch
    %984 = sbr.rel (%p982) target = $region25
  $region24: #{tpu_custom_call.1} parent=0 // pred_region
    %v985 = vld [vmem:[#allocation2] sm:$0xff]
    %v986 = vld [vmem:[#allocation2 + $0x8] sm:$0xff]
    %v987 = vld [vmem:[#allocation2 + $0x10] sm:$0xff]
    %v988 = vld [vmem:[#allocation2 + $0x18] sm:$0xff]
    %v989 = vld [vmem:[#allocation2 + $0x20] sm:$0xff]
    %v990 = vld [vmem:[#allocation2 + $0x28] sm:$0xff]
    %v991 = vld [vmem:[#allocation2 + $0x30] sm:$0xff]
    %v992 = vld [vmem:[#allocation2 + $0x38] sm:$0xff]
    %v993 = vld [vmem:[#allocation2 + $0x40] sm:$0xff]
    %v994 = vld [vmem:[#allocation2 + $0x48] sm:$0xff]
    %v995 = vld [vmem:[#allocation2 + $0x50] sm:$0xff]
    %v996 = vld [vmem:[#allocation2 + $0x58] sm:$0xff]
    %v997 = vld [vmem:[#allocation2 + $0x60] sm:$0xff]
    %v998 = vld [vmem:[#allocation2 + $0x68] sm:$0xff]
    %v999 = vld [vmem:[#allocation2 + $0x70] sm:$0xff]
    %v1000 = vld [vmem:[#allocation2 + $0x78] sm:$0xff]
    %1001 = vadd.xlane.f32.xlu0 %v985
    %v1002 = vpop.xlane.xlu0 %1001
    %1003 = vadd.xlane.f32.xlu0 %v986
    %v1004 = vpop.xlane.xlu0 %1003
    %1005 = vadd.xlane.f32.xlu0 %v987
    %v1006 = vpop.xlane.xlu0 %1005
    %1007 = vadd.xlane.f32.xlu0 %v988
    %v1008 = vpop.xlane.xlu0 %1007
    %1009 = vadd.xlane.f32.xlu0 %v989
    %v1010 = vpop.xlane.xlu0 %1009
    %1011 = vadd.xlane.f32.xlu0 %v990
    %v1012 = vpop.xlane.xlu0 %1011
    %1013 = vadd.xlane.f32.xlu0 %v991
    %v1014 = vpop.xlane.xlu0 %1013
    %1015 = vadd.xlane.f32.xlu0 %v992
    %v1016 = vpop.xlane.xlu0 %1015
    %1017 = vadd.xlane.f32.xlu0 %v993
    %v1018 = vpop.xlane.xlu0 %1017
    %1019 = vadd.xlane.f32.xlu0 %v994
    %v1020 = vpop.xlane.xlu0 %1019
    %1021 = vadd.xlane.f32.xlu0 %v995
    %v1022 = vpop.xlane.xlu0 %1021
    %1023 = vadd.xlane.f32.xlu0 %v996
    %v1024 = vpop.xlane.xlu0 %1023
    %1025 = vadd.xlane.f32.xlu0 %v997
    %v1026 = vpop.xlane.xlu0 %1025
    %1027 = vadd.xlane.f32.xlu0 %v998
    %v1028 = vpop.xlane.xlu0 %1027
    %1029 = vadd.xlane.f32.xlu0 %v999
    %v1030 = vpop.xlane.xlu0 %1029
    %1031 = vadd.xlane.f32.xlu0 %v1000
    %v1032 = vpop.xlane.xlu0 %1031
    %v1033 = vld [vmem:[#allocation3] sm:$0xff]
    %v1034 = vld [vmem:[#allocation3 + $0x8] sm:$0xff]
    %v1035 = vld [vmem:[#allocation3 + $0x10] sm:$0xff]
    %v1036 = vld [vmem:[#allocation3 + $0x18] sm:$0xff]
    %v1037 = vld [vmem:[#allocation3 + $0x20] sm:$0xff]
    %v1038 = vld [vmem:[#allocation3 + $0x28] sm:$0xff]
    %v1039 = vld [vmem:[#allocation3 + $0x30] sm:$0xff]
    %v1040 = vld [vmem:[#allocation3 + $0x38] sm:$0xff]
    %v1041 = vld [vmem:[#allocation3 + $0x40] sm:$0xff]
    %v1042 = vld [vmem:[#allocation3 + $0x48] sm:$0xff]
    %v1043 = vld [vmem:[#allocation3 + $0x50] sm:$0xff]
    %v1044 = vld [vmem:[#allocation3 + $0x58] sm:$0xff]
    %v1045 = vld [vmem:[#allocation3 + $0x60] sm:$0xff]
    %v1046 = vld [vmem:[#allocation3 + $0x68] sm:$0xff]
    %v1047 = vld [vmem:[#allocation3 + $0x70] sm:$0xff]
    %v1048 = vld [vmem:[#allocation3 + $0x78] sm:$0xff]
    %1049 = vadd.xlane.f32.xlu0 %v1033
    %v1050 = vpop.xlane.xlu0 %1049
    %1051 = vadd.xlane.f32.xlu0 %v1034
    %v1052 = vpop.xlane.xlu0 %1051
    %1053 = vadd.xlane.f32.xlu0 %v1035
    %v1054 = vpop.xlane.xlu0 %1053
    %1055 = vadd.xlane.f32.xlu0 %v1036
    %v1056 = vpop.xlane.xlu0 %1055
    %1057 = vadd.xlane.f32.xlu0 %v1037
    %v1058 = vpop.xlane.xlu0 %1057
    %1059 = vadd.xlane.f32.xlu0 %v1038
    %v1060 = vpop.xlane.xlu0 %1059
    %1061 = vadd.xlane.f32.xlu0 %v1039
    %v1062 = vpop.xlane.xlu0 %1061
    %1063 = vadd.xlane.f32.xlu0 %v1040
    %v1064 = vpop.xlane.xlu0 %1063
    %1065 = vadd.xlane.f32.xlu0 %v1041
    %v1066 = vpop.xlane.xlu0 %1065
    %1067 = vadd.xlane.f32.xlu0 %v1042
    %v1068 = vpop.xlane.xlu0 %1067
    %1069 = vadd.xlane.f32.xlu0 %v1043
    %v1070 = vpop.xlane.xlu0 %1069
    %1071 = vadd.xlane.f32.xlu0 %v1044
    %v1072 = vpop.xlane.xlu0 %1071
    %1073 = vadd.xlane.f32.xlu0 %v1045
    %v1074 = vpop.xlane.xlu0 %1073
    %1075 = vadd.xlane.f32.xlu0 %v1046
    %v1076 = vpop.xlane.xlu0 %1075
    %1077 = vadd.xlane.f32.xlu0 %v1047
    %v1078 = vpop.xlane.xlu0 %1077
    %1079 = vadd.xlane.f32.xlu0 %v1048
    %v1080 = vpop.xlane.xlu0 %1079
    %v1081 = vld [vmem:[#allocation4] sm:$0xff]
    %v1082 = vld [vmem:[#allocation4 + $0x8] sm:$0xff]
    %v1083 = vld [vmem:[#allocation4 + $0x10] sm:$0xff]
    %v1084 = vld [vmem:[#allocation4 + $0x18] sm:$0xff]
    %v1085 = vld [vmem:[#allocation4 + $0x20] sm:$0xff]
    %v1086 = vld [vmem:[#allocation4 + $0x28] sm:$0xff]
    %v1087 = vld [vmem:[#allocation4 + $0x30] sm:$0xff]
    %v1088 = vld [vmem:[#allocation4 + $0x38] sm:$0xff]
    %v1089 = vld [vmem:[#allocation4 + $0x40] sm:$0xff]
    %v1090 = vld [vmem:[#allocation4 + $0x48] sm:$0xff]
    %v1091 = vld [vmem:[#allocation4 + $0x50] sm:$0xff]
    %v1092 = vld [vmem:[#allocation4 + $0x58] sm:$0xff]
    %v1093 = vld [vmem:[#allocation4 + $0x60] sm:$0xff]
    %v1094 = vld [vmem:[#allocation4 + $0x68] sm:$0xff]
    %v1095 = vld [vmem:[#allocation4 + $0x70] sm:$0xff]
    %v1096 = vld [vmem:[#allocation4 + $0x78] sm:$0xff]
    %1097 = vadd.xlane.f32.xlu0 %v1081
    %v1098 = vpop.xlane.xlu0 %1097
    %1099 = vadd.xlane.f32.xlu0 %v1082
    %v1100 = vpop.xlane.xlu0 %1099
    %1101 = vadd.xlane.f32.xlu0 %v1083
    %v1102 = vpop.xlane.xlu0 %1101
    %1103 = vadd.xlane.f32.xlu0 %v1084
    %v1104 = vpop.xlane.xlu0 %1103
    %1105 = vadd.xlane.f32.xlu0 %v1085
    %v1106 = vpop.xlane.xlu0 %1105
    %1107 = vadd.xlane.f32.xlu0 %v1086
    %v1108 = vpop.xlane.xlu0 %1107
    %1109 = vadd.xlane.f32.xlu0 %v1087
    %v1110 = vpop.xlane.xlu0 %1109
    %1111 = vadd.xlane.f32.xlu0 %v1088
    %v1112 = vpop.xlane.xlu0 %1111
    %1113 = vadd.xlane.f32.xlu0 %v1089
    %v1114 = vpop.xlane.xlu0 %1113
    %1115 = vadd.xlane.f32.xlu0 %v1090
    %v1116 = vpop.xlane.xlu0 %1115
    %1117 = vadd.xlane.f32.xlu0 %v1091
    %v1118 = vpop.xlane.xlu0 %1117
    %1119 = vadd.xlane.f32.xlu0 %v1092
    %v1120 = vpop.xlane.xlu0 %1119
    %1121 = vadd.xlane.f32.xlu0 %v1093
    %v1122 = vpop.xlane.xlu0 %1121
    %1123 = vadd.xlane.f32.xlu0 %v1094
    %v1124 = vpop.xlane.xlu0 %1123
    %1125 = vadd.xlane.f32.xlu0 %v1095
    %v1126 = vpop.xlane.xlu0 %1125
    %1127 = vadd.xlane.f32.xlu0 %v1096
    %v1128 = vpop.xlane.xlu0 %1127
    %v1129 = vadd.f32 %v1098, 1e-08
    %v1130 = vadd.f32 %v1100, 1e-08
    %v1131 = vadd.f32 %v1102, 1e-08
    %v1132 = vadd.f32 %v1104, 1e-08
    %v1133 = vadd.f32 %v1106, 1e-08
    %v1134 = vadd.f32 %v1108, 1e-08
    %v1135 = vadd.f32 %v1110, 1e-08
    %v1136 = vadd.f32 %v1112, 1e-08
    %v1137 = vadd.f32 %v1114, 1e-08
    %v1138 = vadd.f32 %v1116, 1e-08
    %v1139 = vadd.f32 %v1118, 1e-08
    %v1140 = vadd.f32 %v1120, 1e-08
    %v1141 = vadd.f32 %v1122, 1e-08
    %v1142 = vadd.f32 %v1124, 1e-08
    %v1143 = vadd.f32 %v1126, 1e-08
    %v1144 = vadd.f32 %v1128, 1e-08
    %v1145 = vlog2.pop %v1129
    %v1146 = vmul.f32 %v1145, 0.6931472
    %v1147 = vlog2.pop %v1130
    %v1148 = vmul.f32 %v1147, 0.6931472
    %v1149 = vlog2.pop %v1131
    %v1150 = vmul.f32 %v1149, 0.6931472
    %v1151 = vlog2.pop %v1132
    %v1152 = vmul.f32 %v1151, 0.6931472
    %v1153 = vlog2.pop %v1133
    %v1154 = vmul.f32 %v1153, 0.6931472
    %v1155 = vlog2.pop %v1134
    %v1156 = vmul.f32 %v1155, 0.6931472
    %v1157 = vlog2.pop %v1135
    %v1158 = vmul.f32 %v1157, 0.6931472
    %v1159 = vlog2.pop %v1136
    %v1160 = vmul.f32 %v1159, 0.6931472
    %v1161 = vlog2.pop %v1137
    %v1162 = vmul.f32 %v1161, 0.6931472
    %v1163 = vlog2.pop %v1138
    %v1164 = vmul.f32 %v1163, 0.6931472
    %v1165 = vlog2.pop %v1139
    %v1166 = vmul.f32 %v1165, 0.6931472
    %v1167 = vlog2.pop %v1140
    %v1168 = vmul.f32 %v1167, 0.6931472
    %v1169 = vlog2.pop %v1141
    %v1170 = vmul.f32 %v1169, 0.6931472
    %v1171 = vlog2.pop %v1142
    %v1172 = vmul.f32 %v1171, 0.6931472
    %v1173 = vlog2.pop %v1143
    %v1174 = vmul.f32 %v1173, 0.6931472
    %v1175 = vlog2.pop %v1144
    %v1176 = vmul.f32 %v1175, 0.6931472
    %v1177 = vmul.f32 %v1050, %v1146
    %v1178 = vmul.f32 %v1052, %v1148
    %v1179 = vmul.f32 %v1054, %v1150
    %v1180 = vmul.f32 %v1056, %v1152
    %v1181 = vmul.f32 %v1058, %v1154
    %v1182 = vmul.f32 %v1060, %v1156
    %v1183 = vmul.f32 %v1062, %v1158
    %v1184 = vmul.f32 %v1064, %v1160
    %v1185 = vmul.f32 %v1066, %v1162
    %v1186 = vmul.f32 %v1068, %v1164
    %v1187 = vmul.f32 %v1070, %v1166
    %v1188 = vmul.f32 %v1072, %v1168
    %v1189 = vmul.f32 %v1074, %v1170
    %v1190 = vmul.f32 %v1076, %v1172
    %v1191 = vmul.f32 %v1078, %v1174
    %v1192 = vmul.f32 %v1080, %v1176
    %v1193 = vsub.f32 %v1002, %v1177
    %v1194 = vsub.f32 %v1004, %v1178
    %v1195 = vsub.f32 %v1006, %v1179
    %v1196 = vsub.f32 %v1008, %v1180
    %v1197 = vsub.f32 %v1010, %v1181
    %v1198 = vsub.f32 %v1012, %v1182
    %v1199 = vsub.f32 %v1014, %v1183
    %v1200 = vsub.f32 %v1016, %v1184
    %v1201 = vsub.f32 %v1018, %v1185
    %v1202 = vsub.f32 %v1020, %v1186
    %v1203 = vsub.f32 %v1022, %v1187
    %v1204 = vsub.f32 %v1024, %v1188
    %v1205 = vsub.f32 %v1026, %v1189
    %v1206 = vsub.f32 %v1028, %v1190
    %v1207 = vsub.f32 %v1030, %v1191
    %v1208 = vsub.f32 %v1032, %v1192
    %v1209 = vadd.f32 %v1050, 1e-08
    %v1210 = vadd.f32 %v1052, 1e-08
    %v1211 = vadd.f32 %v1054, 1e-08
    %v1212 = vadd.f32 %v1056, 1e-08
    %v1213 = vadd.f32 %v1058, 1e-08
    %v1214 = vadd.f32 %v1060, 1e-08
    %v1215 = vadd.f32 %v1062, 1e-08
    %v1216 = vadd.f32 %v1064, 1e-08
    %v1217 = vadd.f32 %v1066, 1e-08
    %v1218 = vadd.f32 %v1068, 1e-08
    %v1219 = vadd.f32 %v1070, 1e-08
    %v1220 = vadd.f32 %v1072, 1e-08
    %v1221 = vadd.f32 %v1074, 1e-08
    %v1222 = vadd.f32 %v1076, 1e-08
    %v1223 = vadd.f32 %v1078, 1e-08
    %v1224 = vadd.f32 %v1080, 1e-08
    %v1225 = vrcp.pop %v1209
    %v1226 = vmul.f32 %v1193, %v1225
    %v1227 = vrcp.pop %v1210
    %v1228 = vmul.f32 %v1194, %v1227
    %v1229 = vrcp.pop %v1211
    %v1230 = vmul.f32 %v1195, %v1229
    %v1231 = vrcp.pop %v1212
    %v1232 = vmul.f32 %v1196, %v1231
    %v1233 = vrcp.pop %v1213
    %v1234 = vmul.f32 %v1197, %v1233
    %v1235 = vrcp.pop %v1214
    %v1236 = vmul.f32 %v1198, %v1235
    %v1237 = vrcp.pop %v1215
    %v1238 = vmul.f32 %v1199, %v1237
    %v1239 = vrcp.pop %v1216
    %v1240 = vmul.f32 %v1200, %v1239
    %v1241 = vrcp.pop %v1217
    %v1242 = vmul.f32 %v1201, %v1241
    %v1243 = vrcp.pop %v1218
    %v1244 = vmul.f32 %v1202, %v1243
    %v1245 = vrcp.pop %v1219
    %v1246 = vmul.f32 %v1203, %v1245
    %v1247 = vrcp.pop %v1220
    %v1248 = vmul.f32 %v1204, %v1247
    %v1249 = vrcp.pop %v1221
    %v1250 = vmul.f32 %v1205, %v1249
    %v1251 = vrcp.pop %v1222
    %v1252 = vmul.f32 %v1206, %v1251
    %v1253 = vrcp.pop %v1223
    %v1254 = vmul.f32 %v1207, %v1253
    %v1255 = vrcp.pop %v1224
    %v1256 = vmul.f32 %v1208, %v1255
    %vm1257 = vcmask 7168
    %1258 = vst.msk [vmem:[%s4] sm:$0xff] %vm1257, %v1226
    %1259 = vst.msk [vmem:[%s4 + $0x8] sm:$0xff] %vm1257, %v1228
    %1260 = vst.msk [vmem:[%s4 + $0x10] sm:$0xff] %vm1257, %v1230
    %1261 = vst.msk [vmem:[%s4 + $0x18] sm:$0xff] %vm1257, %v1232
    %1262 = vst.msk [vmem:[%s4 + $0x20] sm:$0xff] %vm1257, %v1234
    %1263 = vst.msk [vmem:[%s4 + $0x28] sm:$0xff] %vm1257, %v1236
    %1264 = vst.msk [vmem:[%s4 + $0x30] sm:$0xff] %vm1257, %v1238
    %1265 = vst.msk [vmem:[%s4 + $0x38] sm:$0xff] %vm1257, %v1240
    %1266 = vst.msk [vmem:[%s4 + $0x40] sm:$0xff] %vm1257, %v1242
    %1267 = vst.msk [vmem:[%s4 + $0x48] sm:$0xff] %vm1257, %v1244
    %1268 = vst.msk [vmem:[%s4 + $0x50] sm:$0xff] %vm1257, %v1246
    %1269 = vst.msk [vmem:[%s4 + $0x58] sm:$0xff] %vm1257, %v1248
    %1270 = vst.msk [vmem:[%s4 + $0x60] sm:$0xff] %vm1257, %v1250
    %1271 = vst.msk [vmem:[%s4 + $0x68] sm:$0xff] %vm1257, %v1252
    %1272 = vst.msk [vmem:[%s4 + $0x70] sm:$0xff] %vm1257, %v1254
    %1273 = vst.msk [vmem:[%s4 + $0x78] sm:$0xff] %vm1257, %v1256
  $region25: #{tpu_custom_call.1} parent=0 // pred_fallthru
    _
  // Predicated region
  $region26: #{tpu_custom_call.1} parent=0 // pred_check
    _
  $region27: #{tpu_custom_call.1} parent=0 // pred_check_branch
    %1275 = sbr.rel (0) target = $region29
  $region28: #{tpu_custom_call.1} parent=0 // pred_region
    _
  $region29: #{tpu_custom_call.1} parent=0 // pred_fallthru
    _
  // Predicated region
  $region30: #{tpu_custom_call.1} parent=0 // pred_check
    _
  $region31: #{tpu_custom_call.1} parent=0 // pred_check_branch
    %1277 = sbr.rel (0) target = $region33
  $region32: #{tpu_custom_call.1} parent=0 // pred_region
    _
  $region33: #{tpu_custom_call.1} parent=0 // pred_fallthru
    _

</llo_original>
